<compile_context>
chip_gen: v5e
topology: v5e:2x2
jax: 0.10.0
libtpu: 0.0.40
codegen_flags: <defaults>
</compile_context>

<pallas_src>
import jax
import jax.numpy as jnp
from jax.experimental import pallas as pl
from jax.experimental.pallas import tpu as pltpu


# bf16 MXU operands are single-pass on the v6e/v7x 256^2 MXU and shorten the
# serial h @ W_hh chain.  On v5e keep jnp.float32 (no bf16 VPU/EUP, 128^2 MXUs).
MXU_DTYPE = jnp.bfloat16


def _lstm_seq_kernel(vid_ref, tid_ref, vtab_ref, ttab_ref, whh_ref,
                     h0_ref, c0_ref, out_ref, h_out_ref, c_out_ref):
    """Whole-sequence LSTM recurrence in a single kernel invocation (no grid).

    vid_ref, tid_ref : SMEM (T,) int32      token ids
    vtab_ref : VMEM (Vv, 4H) f32   value_emb @ W_ih^T[:Dv] + bias (gate-scaled)
    ttab_ref : VMEM (Vt, 4H) f32   type_emb  @ W_ih^T[Dv:]        (gate-scaled)
    whh_ref  : VMEM (H, 4H) MXU_DTYPE   W_hh^T                    (gate-scaled)
    h0_ref, c0_ref       : VMEM (1, H) f32
    out_ref              : VMEM (T, H) f32
    h_out_ref, c_out_ref : VMEM (1, H) f32
    Gate order along the 4H axis is PyTorch's (i, f, g, o).
    """
    T, H = out_ref.shape

    whh = whh_ref[...]                                    # (H, 4H), loaded once

    # Per-step input contribution: two gathered rows (bias already folded into
    # the value table).  Independent of the recurrence, so the scheduler can
    # hoist/overlap these loads with the serial chain.
    xrow = [vtab_ref[pl.ds(vid_ref[t], 1), :] + ttab_ref[pl.ds(tid_ref[t], 1), :]
            for t in range(T)]                            # T x (1, 4H)

    h = h0_ref[...]                                       # (1, H) f32
    c = c0_ref[...]                                       # (1, H) f32
    rows = []
    for t in range(T):                                    # static unroll, T small
        # ONE fused recurrent matmul per step (i|f|g|o column groups pipeline
        # through the MXU instead of 4 separate push/pop round trips).
        pre = xrow[t] + jnp.dot(h.astype(whh.dtype), whh,
                                preferred_element_type=jnp.float32)   # (1, 4H)
        # i/f/o columns were pre-scaled by 0.5 at pack time, so a single tanh
        # gives sigmoid for i/f/o (0.5*(tanh+1)) and tanh for g directly.
        tg = jnp.tanh(pre)
        i = 0.5 * (tg[:, 0 * H:1 * H] + 1.0)
        f = 0.5 * (tg[:, 1 * H:2 * H] + 1.0)
        g = tg[:, 2 * H:3 * H]
        o = 0.5 * (tg[:, 3 * H:4 * H] + 1.0)
        c = f * c + i * g
        h = o * jnp.tanh(c)
        rows.append(h)

    # One unmasked lane-dense (T, H) store instead of T masked row stores.
    out_ref[...] = jnp.concatenate(rows, axis=0).astype(out_ref.dtype)
    h_out_ref[...] = h.astype(h_out_ref.dtype)
    c_out_ref[...] = c.astype(c_out_ref.dtype)


def pack_lstm_params(value_emb, type_emb, w_ih, w_hh, b_ih, b_hh,
                     mxu_dtype=MXU_DTYPE):
    """One-time parameter re-pack. Call at parameter-load time, OUTSIDE the
    jitted per-call forward (hoists reshape/transpose/precompose off the hot path).

    NOTE: relies on PyTorch nn.LSTM's (i, f, g, o) gate ordering of the
    stacked 4H axis of w_ih / w_hh / b_ih / b_hh.
    """
    H = w_hh.shape[1]
    D = w_ih.shape[1]
    Dv = value_emb.shape[1]
    assert w_ih.shape == (4 * H, D) and w_hh.shape == (4 * H, H)
    assert b_ih.shape == (4 * H,) and b_hh.shape == (4 * H,)
    assert value_emb.shape[1] + type_emb.shape[1] == D

    hp = jax.lax.Precision.HIGHEST
    w_ih_t = jnp.asarray(w_ih, jnp.float32).T                      # (D, 4H)
    w_hh_t = jnp.asarray(w_hh, jnp.float32).T                      # (H, 4H)
    bias = (jnp.asarray(b_ih, jnp.float32)
            + jnp.asarray(b_hh, jnp.float32)).reshape(1, 4 * H)

    # sigmoid(x) = 0.5*(1 + tanh(x/2)):  pre-scale i, f, o gate columns by 0.5
    # so the kernel needs a single tanh over the whole (1, 4H) pre-activation.
    gate_scale = jnp.concatenate(
        [jnp.full((1, H), 0.5, jnp.float32),     # i
         jnp.full((1, H), 0.5, jnp.float32),     # f
         jnp.ones((1, H), jnp.float32),          # g  (tanh gate, unscaled)
         jnp.full((1, H), 0.5, jnp.float32)],    # o
        axis=1)
    w_ih_t = w_ih_t * gate_scale
    w_hh_t = w_hh_t * gate_scale
    bias = bias * gate_scale

    # Fold embedding lookup + input projection into per-vocab-row tables:
    #   x_t @ W_ih^T = E_v[vid_t] @ W_ih^T[:Dv] + E_t[tid_t] @ W_ih^T[Dv:]
    # (bias folded once, into the value table).
    vtab = jnp.dot(jnp.asarray(value_emb, jnp.float32), w_ih_t[:Dv],
                   precision=hp) + bias                            # (Vv, 4H)
    ttab = jnp.dot(jnp.asarray(type_emb, jnp.float32), w_ih_t[Dv:],
                   precision=hp)                                   # (Vt, 4H)
    return {"vtab": vtab, "ttab": ttab, "whh": w_hh_t.astype(mxu_dtype)}


def lstm_component_forward(packed, value_ids, type_ids, h0, c0):
    """Jitted per-call forward. Matches LSTM_component.forward (batch = 1)."""
    vtab, ttab, whh = packed["vtab"], packed["ttab"], packed["whh"]
    H = whh.shape[0]
    T = value_ids.shape[0]

    smem = pl.BlockSpec(memory_space=pltpu.MemorySpace.SMEM)
    vmem = pl.BlockSpec(memory_space=pltpu.MemorySpace.VMEM)

    def _nbytes(a):
        return a.size * a.dtype.itemsize

    cost = pl.CostEstimate(
        flops=2 * T * H * 4 * H,                 # recurrent matmuls
        transcendentals=5 * T * H,               # 4-gate tanh + tanh(c) per step
        bytes_accessed=(_nbytes(vtab) + _nbytes(ttab) + _nbytes(whh)
                        + 2 * T * 4 + (T * H + 4 * H) * 4),
    )

    # TODO(synk): everything is VMEM-resident with no grid; for very long
    # sequences (T ~ 10k+, threshold 2x lower on v7x's 64 MiB VMEM) switch to a
    # grid over T-tiles with h/c carried in scratch.
    out, h_n, c_n = pl.pallas_call(
        _lstm_seq_kernel,
        out_shape=(
            jax.ShapeDtypeStruct((T, H), jnp.float32),
            jax.ShapeDtypeStruct((1, H), jnp.float32),
            jax.ShapeDtypeStruct((1, H), jnp.float32),
        ),
        in_specs=[smem, smem, vmem, vmem, vmem, vmem, vmem],
        out_specs=(vmem, vmem, vmem),
        cost_estimate=cost,
    )(value_ids.astype(jnp.int32), type_ids.astype(jnp.int32),
      vtab, ttab, whh,
      h0.reshape(1, H).astype(jnp.float32),
      c0.reshape(1, H).astype(jnp.float32))

    # Match PyTorch nn.LSTM return shapes: (T, 1, H), (1, 1, H), (1, 1, H).
    return out.reshape(T, 1, H), h_n.reshape(1, 1, H), c_n.reshape(1, 1, H)


def _lstm_reference(value_ids, type_ids, value_emb, type_emb,
                    w_ih, w_hh, b_ih, b_hh, h0, c0):
    """Pure-JAX reference of the PyTorch forward (f32, HIGHEST precision)."""
    ev = value_emb[value_ids]
    et = type_emb[type_ids]
    x = jnp.concatenate([ev, et], axis=1)
    H = w_hh.shape[1]
    hp = jax.lax.Precision.HIGHEST
    h = h0.reshape(1, H)
    c = c0.reshape(1, H)
    outs = []
    for t in range(x.shape[0]):
        gates = (jnp.dot(x[t:t + 1], w_ih.T, precision=hp) + b_ih
                 + jnp.dot(h, w_hh.T, precision=hp) + b_hh)
        i = jax.nn.sigmoid(gates[:, 0:H])
        f = jax.nn.sigmoid(gates[:, H:2 * H])
        g = jnp.tanh(gates[:, 2 * H:3 * H])
        o = jax.nn.sigmoid(gates[:, 3 * H:4 * H])
        c = f * c + i * g
        h = o * jnp.tanh(c)
        outs.append(h)
    return jnp.stack(outs, axis=0), h.reshape(1, 1, H), c.reshape(1, 1, H)


if __name__ == "__main__":
    key = jax.random.PRNGKey(0)
    ks = jax.random.split(key, 10)

    # Small shapes consistent with the module's forward (batch = 1).
    vocab_value_size, value_dim = 40, 16
    vocab_type_size, type_dim = 12, 16
    hidden_dim = 128          # multiple of 128 -> lane-aligned gate slices/stores
    seq_len = 8

    value_emb = 0.1 * jax.random.normal(ks[0], (vocab_value_size, value_dim),
                                        jnp.float32)
    type_emb = 0.1 * jax.random.normal(ks[1], (vocab_type_size, type_dim),
                                       jnp.float32)
    D = value_dim + type_dim
    w_ih = 0.1 * jax.random.normal(ks[2], (4 * hidden_dim, D), jnp.float32)
    w_hh = 0.1 * jax.random.normal(ks[3], (4 * hidden_dim, hidden_dim),
                                   jnp.float32)
    b_ih = 0.1 * jax.random.normal(ks[4], (4 * hidden_dim,), jnp.float32)
    b_hh = 0.1 * jax.random.normal(ks[5], (4 * hidden_dim,), jnp.float32)

    value_ids = jax.random.randint(ks[6], (seq_len,), 0, vocab_value_size,
                                   jnp.int32)
    type_ids = jax.random.randint(ks[7], (seq_len,), 0, vocab_type_size,
                                  jnp.int32)
    h0 = 0.1 * jax.random.normal(ks[8], (1, 1, hidden_dim), jnp.float32)
    c0 = 0.1 * jax.random.normal(ks[9], (1, 1, hidden_dim), jnp.float32)

    # One-time parameter pack (hoisted out of the jitted per-call forward).
    packed = pack_lstm_params(value_emb, type_emb, w_ih, w_hh, b_ih, b_hh)

    fwd = jax.jit(lstm_component_forward)
    lstm_out, lstm_h, lstm_c = jax.block_until_ready(
        fwd(packed, value_ids, type_ids, h0, c0))

    ref_out, ref_h, ref_c = _lstm_reference(value_ids, type_ids, value_emb,
                                            type_emb, w_ih, w_hh, b_ih, b_hh,
                                            h0, c0)

    assert lstm_out.shape == (seq_len, 1, hidden_dim)
    assert lstm_h.shape == (1, 1, hidden_dim)
    assert lstm_c.shape == (1, 1, hidden_dim)

    # bf16 recurrent MXU operands (v6e/v7x setting) -> relaxed tolerance vs the
    # f32 HIGHEST-precision reference; with MXU_DTYPE=float32 it matches ~1e-4.
    tol = 1e-2 if MXU_DTYPE == jnp.bfloat16 else 1e-4
    assert jnp.allclose(lstm_out, ref_out, atol=tol, rtol=tol)
    assert jnp.allclose(lstm_h, ref_h, atol=tol, rtol=tol)
    assert jnp.allclose(lstm_c, ref_c, atol=tol, rtol=tol)

    print("KERNEL_OK")
</pallas_src>

<mosaic_0001>
module attributes {stable_mosaic.version = 11 : i64} {
  func.func @_lstm_seq_kernel(%arg0: memref<8xi32, #tpu.memory_space<smem>>, %arg1: memref<8xi32, #tpu.memory_space<smem>>, %arg2: memref<40x512xf32, #tpu.memory_space<vmem>>, %arg3: memref<12x512xf32, #tpu.memory_space<vmem>>, %arg4: memref<128x512xbf16, #tpu.memory_space<vmem>>, %arg5: memref<1x128xf32, #tpu.memory_space<vmem>>, %arg6: memref<1x128xf32, #tpu.memory_space<vmem>>, %arg7: memref<8x128xf32, #tpu.memory_space<vmem>>, %arg8: memref<1x128xf32, #tpu.memory_space<vmem>>, %arg9: memref<1x128xf32, #tpu.memory_space<vmem>>) attributes {dimension_semantics = [], scalar_prefetch = 0 : i64, scratch_operands = 0 : i64, tpu.core_type = #tpu.core_type<tc>} {
    %c0 = arith.constant 0 : index
    %c0_0 = arith.constant 0 : index
    %0 = vector.load %arg4[%c0, %c0_0] : memref<128x512xbf16, #tpu.memory_space<vmem>>, vector<128x512xbf16>
    %c0_1 = arith.constant 0 : index
    %1 = memref.load %arg0[%c0_1] : memref<8xi32, #tpu.memory_space<smem>>
    %2 = arith.index_cast %1 : i32 to index
    %c0_2 = arith.constant 0 : index
    %3 = vector.load %arg2[%2, %c0_2] : memref<40x512xf32, #tpu.memory_space<vmem>>, vector<1x512xf32>
    %c0_3 = arith.constant 0 : index
    %4 = memref.load %arg1[%c0_3] : memref<8xi32, #tpu.memory_space<smem>>
    %5 = arith.index_cast %4 : i32 to index
    %c0_4 = arith.constant 0 : index
    %6 = vector.load %arg3[%5, %c0_4] : memref<12x512xf32, #tpu.memory_space<vmem>>, vector<1x512xf32>
    %7 = arith.addf %3, %6 : vector<1x512xf32>
    %c1 = arith.constant 1 : index
    %8 = memref.load %arg0[%c1] : memref<8xi32, #tpu.memory_space<smem>>
    %9 = arith.index_cast %8 : i32 to index
    %c0_5 = arith.constant 0 : index
    %10 = vector.load %arg2[%9, %c0_5] : memref<40x512xf32, #tpu.memory_space<vmem>>, vector<1x512xf32>
    %c1_6 = arith.constant 1 : index
    %11 = memref.load %arg1[%c1_6] : memref<8xi32, #tpu.memory_space<smem>>
    %12 = arith.index_cast %11 : i32 to index
    %c0_7 = arith.constant 0 : index
    %13 = vector.load %arg3[%12, %c0_7] : memref<12x512xf32, #tpu.memory_space<vmem>>, vector<1x512xf32>
    %14 = arith.addf %10, %13 : vector<1x512xf32>
    %c2 = arith.constant 2 : index
    %15 = memref.load %arg0[%c2] : memref<8xi32, #tpu.memory_space<smem>>
    %16 = arith.index_cast %15 : i32 to index
    %c0_8 = arith.constant 0 : index
    %17 = vector.load %arg2[%16, %c0_8] : memref<40x512xf32, #tpu.memory_space<vmem>>, vector<1x512xf32>
    %c2_9 = arith.constant 2 : index
    %18 = memref.load %arg1[%c2_9] : memref<8xi32, #tpu.memory_space<smem>>
    %19 = arith.index_cast %18 : i32 to index
    %c0_10 = arith.constant 0 : index
    %20 = vector.load %arg3[%19, %c0_10] : memref<12x512xf32, #tpu.memory_space<vmem>>, vector<1x512xf32>
    %21 = arith.addf %17, %20 : vector<1x512xf32>
    %c3 = arith.constant 3 : index
    %22 = memref.load %arg0[%c3] : memref<8xi32, #tpu.memory_space<smem>>
    %23 = arith.index_cast %22 : i32 to index
    %c0_11 = arith.constant 0 : index
    %24 = vector.load %arg2[%23, %c0_11] : memref<40x512xf32, #tpu.memory_space<vmem>>, vector<1x512xf32>
    %c3_12 = arith.constant 3 : index
    %25 = memref.load %arg1[%c3_12] : memref<8xi32, #tpu.memory_space<smem>>
    %26 = arith.index_cast %25 : i32 to index
    %c0_13 = arith.constant 0 : index
    %27 = vector.load %arg3[%26, %c0_13] : memref<12x512xf32, #tpu.memory_space<vmem>>, vector<1x512xf32>
    %28 = arith.addf %24, %27 : vector<1x512xf32>
    %c4 = arith.constant 4 : index
    %29 = memref.load %arg0[%c4] : memref<8xi32, #tpu.memory_space<smem>>
    %30 = arith.index_cast %29 : i32 to index
    %c0_14 = arith.constant 0 : index
    %31 = vector.load %arg2[%30, %c0_14] : memref<40x512xf32, #tpu.memory_space<vmem>>, vector<1x512xf32>
    %c4_15 = arith.constant 4 : index
    %32 = memref.load %arg1[%c4_15] : memref<8xi32, #tpu.memory_space<smem>>
    %33 = arith.index_cast %32 : i32 to index
    %c0_16 = arith.constant 0 : index
    %34 = vector.load %arg3[%33, %c0_16] : memref<12x512xf32, #tpu.memory_space<vmem>>, vector<1x512xf32>
    %35 = arith.addf %31, %34 : vector<1x512xf32>
    %c5 = arith.constant 5 : index
    %36 = memref.load %arg0[%c5] : memref<8xi32, #tpu.memory_space<smem>>
    %37 = arith.index_cast %36 : i32 to index
    %c0_17 = arith.constant 0 : index
    %38 = vector.load %arg2[%37, %c0_17] : memref<40x512xf32, #tpu.memory_space<vmem>>, vector<1x512xf32>
    %c5_18 = arith.constant 5 : index
    %39 = memref.load %arg1[%c5_18] : memref<8xi32, #tpu.memory_space<smem>>
    %40 = arith.index_cast %39 : i32 to index
    %c0_19 = arith.constant 0 : index
    %41 = vector.load %arg3[%40, %c0_19] : memref<12x512xf32, #tpu.memory_space<vmem>>, vector<1x512xf32>
    %42 = arith.addf %38, %41 : vector<1x512xf32>
    %c6 = arith.constant 6 : index
    %43 = memref.load %arg0[%c6] : memref<8xi32, #tpu.memory_space<smem>>
    %44 = arith.index_cast %43 : i32 to index
    %c0_20 = arith.constant 0 : index
    %45 = vector.load %arg2[%44, %c0_20] : memref<40x512xf32, #tpu.memory_space<vmem>>, vector<1x512xf32>
    %c6_21 = arith.constant 6 : index
    %46 = memref.load %arg1[%c6_21] : memref<8xi32, #tpu.memory_space<smem>>
    %47 = arith.index_cast %46 : i32 to index
    %c0_22 = arith.constant 0 : index
    %48 = vector.load %arg3[%47, %c0_22] : memref<12x512xf32, #tpu.memory_space<vmem>>, vector<1x512xf32>
    %49 = arith.addf %45, %48 : vector<1x512xf32>
    %c7 = arith.constant 7 : index
    %50 = memref.load %arg0[%c7] : memref<8xi32, #tpu.memory_space<smem>>
    %51 = arith.index_cast %50 : i32 to index
    %c0_23 = arith.constant 0 : index
    %52 = vector.load %arg2[%51, %c0_23] : memref<40x512xf32, #tpu.memory_space<vmem>>, vector<1x512xf32>
    %c7_24 = arith.constant 7 : index
    %53 = memref.load %arg1[%c7_24] : memref<8xi32, #tpu.memory_space<smem>>
    %54 = arith.index_cast %53 : i32 to index
    %c0_25 = arith.constant 0 : index
    %55 = vector.load %arg3[%54, %c0_25] : memref<12x512xf32, #tpu.memory_space<vmem>>, vector<1x512xf32>
    %56 = arith.addf %52, %55 : vector<1x512xf32>
    %c0_26 = arith.constant 0 : index
    %c0_27 = arith.constant 0 : index
    %57 = vector.load %arg5[%c0_26, %c0_27] : memref<1x128xf32, #tpu.memory_space<vmem>>, vector<1x128xf32>
    %c0_28 = arith.constant 0 : index
    %c0_29 = arith.constant 0 : index
    %58 = vector.load %arg6[%c0_28, %c0_29] : memref<1x128xf32, #tpu.memory_space<vmem>>, vector<1x128xf32>
    %59 = arith.truncf %57 : vector<1x128xf32> to vector<1x128xbf16>
    %cst = arith.constant dense<0.000000e+00> : vector<1x512xf32>
    %60 = tpu.matmul %59, %0, %cst {dimension_numbers = #tpu.dot_dimension_numbers<[1], [0], [0], [1], [0, 0, 1, 1], [], []>} : vector<1x128xbf16>, vector<128x512xbf16>, vector<1x512xf32> -> vector<1x512xf32>
    %61 = arith.addf %7, %60 : vector<1x512xf32>
    %62 = math.tanh %61 : vector<1x512xf32>
    %63 = vector.extract_strided_slice %62 {offsets = [0, 0], sizes = [1, 128], strides = [1, 1]} : vector<1x512xf32> to vector<1x128xf32>
    %cst_30 = arith.constant 1.000000e+00 : f32
    %64 = vector.broadcast %cst_30 : f32 to vector<1x128xf32>
    %65 = arith.addf %63, %64 : vector<1x128xf32>
    %cst_31 = arith.constant 5.000000e-01 : f32
    %66 = vector.broadcast %cst_31 : f32 to vector<1x128xf32>
    %67 = arith.mulf %66, %65 : vector<1x128xf32>
    %68 = vector.extract_strided_slice %62 {offsets = [0, 128], sizes = [1, 128], strides = [1, 1]} : vector<1x512xf32> to vector<1x128xf32>
    %cst_32 = arith.constant 1.000000e+00 : f32
    %69 = vector.broadcast %cst_32 : f32 to vector<1x128xf32>
    %70 = arith.addf %68, %69 : vector<1x128xf32>
    %cst_33 = arith.constant 5.000000e-01 : f32
    %71 = vector.broadcast %cst_33 : f32 to vector<1x128xf32>
    %72 = arith.mulf %71, %70 : vector<1x128xf32>
    %73 = vector.extract_strided_slice %62 {offsets = [0, 256], sizes = [1, 128], strides = [1, 1]} : vector<1x512xf32> to vector<1x128xf32>
    %74 = vector.extract_strided_slice %62 {offsets = [0, 384], sizes = [1, 128], strides = [1, 1]} : vector<1x512xf32> to vector<1x128xf32>
    %cst_34 = arith.constant 1.000000e+00 : f32
    %75 = vector.broadcast %cst_34 : f32 to vector<1x128xf32>
    %76 = arith.addf %74, %75 : vector<1x128xf32>
    %cst_35 = arith.constant 5.000000e-01 : f32
    %77 = vector.broadcast %cst_35 : f32 to vector<1x128xf32>
    %78 = arith.mulf %77, %76 : vector<1x128xf32>
    %79 = arith.mulf %72, %58 : vector<1x128xf32>
    %80 = arith.mulf %67, %73 : vector<1x128xf32>
    %81 = arith.addf %79, %80 : vector<1x128xf32>
    %82 = math.tanh %81 : vector<1x128xf32>
    %83 = arith.mulf %78, %82 : vector<1x128xf32>
    %84 = arith.truncf %83 : vector<1x128xf32> to vector<1x128xbf16>
    %cst_36 = arith.constant dense<0.000000e+00> : vector<1x512xf32>
    %85 = tpu.matmul %84, %0, %cst_36 {dimension_numbers = #tpu.dot_dimension_numbers<[1], [0], [0], [1], [0, 0, 1, 1], [], []>} : vector<1x128xbf16>, vector<128x512xbf16>, vector<1x512xf32> -> vector<1x512xf32>
    %86 = arith.addf %14, %85 : vector<1x512xf32>
    %87 = math.tanh %86 : vector<1x512xf32>
    %88 = vector.extract_strided_slice %87 {offsets = [0, 0], sizes = [1, 128], strides = [1, 1]} : vector<1x512xf32> to vector<1x128xf32>
    %cst_37 = arith.constant 1.000000e+00 : f32
    %89 = vector.broadcast %cst_37 : f32 to vector<1x128xf32>
    %90 = arith.addf %88, %89 : vector<1x128xf32>
    %cst_38 = arith.constant 5.000000e-01 : f32
    %91 = vector.broadcast %cst_38 : f32 to vector<1x128xf32>
    %92 = arith.mulf %91, %90 : vector<1x128xf32>
    %93 = vector.extract_strided_slice %87 {offsets = [0, 128], sizes = [1, 128], strides = [1, 1]} : vector<1x512xf32> to vector<1x128xf32>
    %cst_39 = arith.constant 1.000000e+00 : f32
    %94 = vector.broadcast %cst_39 : f32 to vector<1x128xf32>
    %95 = arith.addf %93, %94 : vector<1x128xf32>
    %cst_40 = arith.constant 5.000000e-01 : f32
    %96 = vector.broadcast %cst_40 : f32 to vector<1x128xf32>
    %97 = arith.mulf %96, %95 : vector<1x128xf32>
    %98 = vector.extract_strided_slice %87 {offsets = [0, 256], sizes = [1, 128], strides = [1, 1]} : vector<1x512xf32> to vector<1x128xf32>
    %99 = vector.extract_strided_slice %87 {offsets = [0, 384], sizes = [1, 128], strides = [1, 1]} : vector<1x512xf32> to vector<1x128xf32>
    %cst_41 = arith.constant 1.000000e+00 : f32
    %100 = vector.broadcast %cst_41 : f32 to vector<1x128xf32>
    %101 = arith.addf %99, %100 : vector<1x128xf32>
    %cst_42 = arith.constant 5.000000e-01 : f32
    %102 = vector.broadcast %cst_42 : f32 to vector<1x128xf32>
    %103 = arith.mulf %102, %101 : vector<1x128xf32>
    %104 = arith.mulf %97, %81 : vector<1x128xf32>
    %105 = arith.mulf %92, %98 : vector<1x128xf32>
    %106 = arith.addf %104, %105 : vector<1x128xf32>
    %107 = math.tanh %106 : vector<1x128xf32>
    %108 = arith.mulf %103, %107 : vector<1x128xf32>
    %109 = arith.truncf %108 : vector<1x128xf32> to vector<1x128xbf16>
    %cst_43 = arith.constant dense<0.000000e+00> : vector<1x512xf32>
    %110 = tpu.matmul %109, %0, %cst_43 {dimension_numbers = #tpu.dot_dimension_numbers<[1], [0], [0], [1], [0, 0, 1, 1], [], []>} : vector<1x128xbf16>, vector<128x512xbf16>, vector<1x512xf32> -> vector<1x512xf32>
    %111 = arith.addf %21, %110 : vector<1x512xf32>
    %112 = math.tanh %111 : vector<1x512xf32>
    %113 = vector.extract_strided_slice %112 {offsets = [0, 0], sizes = [1, 128], strides = [1, 1]} : vector<1x512xf32> to vector<1x128xf32>
    %cst_44 = arith.constant 1.000000e+00 : f32
    %114 = vector.broadcast %cst_44 : f32 to vector<1x128xf32>
    %115 = arith.addf %113, %114 : vector<1x128xf32>
    %cst_45 = arith.constant 5.000000e-01 : f32
    %116 = vector.broadcast %cst_45 : f32 to vector<1x128xf32>
    %117 = arith.mulf %116, %115 : vector<1x128xf32>
    %118 = vector.extract_strided_slice %112 {offsets = [0, 128], sizes = [1, 128], strides = [1, 1]} : vector<1x512xf32> to vector<1x128xf32>
    %cst_46 = arith.constant 1.000000e+00 : f32
    %119 = vector.broadcast %cst_46 : f32 to vector<1x128xf32>
    %120 = arith.addf %118, %119 : vector<1x128xf32>
    %cst_47 = arith.constant 5.000000e-01 : f32
    %121 = vector.broadcast %cst_47 : f32 to vector<1x128xf32>
    %122 = arith.mulf %121, %120 : vector<1x128xf32>
    %123 = vector.extract_strided_slice %112 {offsets = [0, 256], sizes = [1, 128], strides = [1, 1]} : vector<1x512xf32> to vector<1x128xf32>
    %124 = vector.extract_strided_slice %112 {offsets = [0, 384], sizes = [1, 128], strides = [1, 1]} : vector<1x512xf32> to vector<1x128xf32>
    %cst_48 = arith.constant 1.000000e+00 : f32
    %125 = vector.broadcast %cst_48 : f32 to vector<1x128xf32>
    %126 = arith.addf %124, %125 : vector<1x128xf32>
    %cst_49 = arith.constant 5.000000e-01 : f32
    %127 = vector.broadcast %cst_49 : f32 to vector<1x128xf32>
    %128 = arith.mulf %127, %126 : vector<1x128xf32>
    %129 = arith.mulf %122, %106 : vector<1x128xf32>
    %130 = arith.mulf %117, %123 : vector<1x128xf32>
    %131 = arith.addf %129, %130 : vector<1x128xf32>
    %132 = math.tanh %131 : vector<1x128xf32>
    %133 = arith.mulf %128, %132 : vector<1x128xf32>
    %134 = arith.truncf %133 : vector<1x128xf32> to vector<1x128xbf16>
    %cst_50 = arith.constant dense<0.000000e+00> : vector<1x512xf32>
    %135 = tpu.matmul %134, %0, %cst_50 {dimension_numbers = #tpu.dot_dimension_numbers<[1], [0], [0], [1], [0, 0, 1, 1], [], []>} : vector<1x128xbf16>, vector<128x512xbf16>, vector<1x512xf32> -> vector<1x512xf32>
    %136 = arith.addf %28, %135 : vector<1x512xf32>
    %137 = math.tanh %136 : vector<1x512xf32>
    %138 = vector.extract_strided_slice %137 {offsets = [0, 0], sizes = [1, 128], strides = [1, 1]} : vector<1x512xf32> to vector<1x128xf32>
    %cst_51 = arith.constant 1.000000e+00 : f32
    %139 = vector.broadcast %cst_51 : f32 to vector<1x128xf32>
    %140 = arith.addf %138, %139 : vector<1x128xf32>
    %cst_52 = arith.constant 5.000000e-01 : f32
    %141 = vector.broadcast %cst_52 : f32 to vector<1x128xf32>
    %142 = arith.mulf %141, %140 : vector<1x128xf32>
    %143 = vector.extract_strided_slice %137 {offsets = [0, 128], sizes = [1, 128], strides = [1, 1]} : vector<1x512xf32> to vector<1x128xf32>
    %cst_53 = arith.constant 1.000000e+00 : f32
    %144 = vector.broadcast %cst_53 : f32 to vector<1x128xf32>
    %145 = arith.addf %143, %144 : vector<1x128xf32>
    %cst_54 = arith.constant 5.000000e-01 : f32
    %146 = vector.broadcast %cst_54 : f32 to vector<1x128xf32>
    %147 = arith.mulf %146, %145 : vector<1x128xf32>
    %148 = vector.extract_strided_slice %137 {offsets = [0, 256], sizes = [1, 128], strides = [1, 1]} : vector<1x512xf32> to vector<1x128xf32>
    %149 = vector.extract_strided_slice %137 {offsets = [0, 384], sizes = [1, 128], strides = [1, 1]} : vector<1x512xf32> to vector<1x128xf32>
    %cst_55 = arith.constant 1.000000e+00 : f32
    %150 = vector.broadcast %cst_55 : f32 to vector<1x128xf32>
    %151 = arith.addf %149, %150 : vector<1x128xf32>
    %cst_56 = arith.constant 5.000000e-01 : f32
    %152 = vector.broadcast %cst_56 : f32 to vector<1x128xf32>
    %153 = arith.mulf %152, %151 : vector<1x128xf32>
    %154 = arith.mulf %147, %131 : vector<1x128xf32>
    %155 = arith.mulf %142, %148 : vector<1x128xf32>
    %156 = arith.addf %154, %155 : vector<1x128xf32>
    %157 = math.tanh %156 : vector<1x128xf32>
    %158 = arith.mulf %153, %157 : vector<1x128xf32>
    %159 = arith.truncf %158 : vector<1x128xf32> to vector<1x128xbf16>
    %cst_57 = arith.constant dense<0.000000e+00> : vector<1x512xf32>
    %160 = tpu.matmul %159, %0, %cst_57 {dimension_numbers = #tpu.dot_dimension_numbers<[1], [0], [0], [1], [0, 0, 1, 1], [], []>} : vector<1x128xbf16>, vector<128x512xbf16>, vector<1x512xf32> -> vector<1x512xf32>
    %161 = arith.addf %35, %160 : vector<1x512xf32>
    %162 = math.tanh %161 : vector<1x512xf32>
    %163 = vector.extract_strided_slice %162 {offsets = [0, 0], sizes = [1, 128], strides = [1, 1]} : vector<1x512xf32> to vector<1x128xf32>
    %cst_58 = arith.constant 1.000000e+00 : f32
    %164 = vector.broadcast %cst_58 : f32 to vector<1x128xf32>
    %165 = arith.addf %163, %164 : vector<1x128xf32>
    %cst_59 = arith.constant 5.000000e-01 : f32
    %166 = vector.broadcast %cst_59 : f32 to vector<1x128xf32>
    %167 = arith.mulf %166, %165 : vector<1x128xf32>
    %168 = vector.extract_strided_slice %162 {offsets = [0, 128], sizes = [1, 128], strides = [1, 1]} : vector<1x512xf32> to vector<1x128xf32>
    %cst_60 = arith.constant 1.000000e+00 : f32
    %169 = vector.broadcast %cst_60 : f32 to vector<1x128xf32>
    %170 = arith.addf %168, %169 : vector<1x128xf32>
    %cst_61 = arith.constant 5.000000e-01 : f32
    %171 = vector.broadcast %cst_61 : f32 to vector<1x128xf32>
    %172 = arith.mulf %171, %170 : vector<1x128xf32>
    %173 = vector.extract_strided_slice %162 {offsets = [0, 256], sizes = [1, 128], strides = [1, 1]} : vector<1x512xf32> to vector<1x128xf32>
    %174 = vector.extract_strided_slice %162 {offsets = [0, 384], sizes = [1, 128], strides = [1, 1]} : vector<1x512xf32> to vector<1x128xf32>
    %cst_62 = arith.constant 1.000000e+00 : f32
    %175 = vector.broadcast %cst_62 : f32 to vector<1x128xf32>
    %176 = arith.addf %174, %175 : vector<1x128xf32>
    %cst_63 = arith.constant 5.000000e-01 : f32
    %177 = vector.broadcast %cst_63 : f32 to vector<1x128xf32>
    %178 = arith.mulf %177, %176 : vector<1x128xf32>
    %179 = arith.mulf %172, %156 : vector<1x128xf32>
    %180 = arith.mulf %167, %173 : vector<1x128xf32>
    %181 = arith.addf %179, %180 : vector<1x128xf32>
    %182 = math.tanh %181 : vector<1x128xf32>
    %183 = arith.mulf %178, %182 : vector<1x128xf32>
    %184 = arith.truncf %183 : vector<1x128xf32> to vector<1x128xbf16>
    %cst_64 = arith.constant dense<0.000000e+00> : vector<1x512xf32>
    %185 = tpu.matmul %184, %0, %cst_64 {dimension_numbers = #tpu.dot_dimension_numbers<[1], [0], [0], [1], [0, 0, 1, 1], [], []>} : vector<1x128xbf16>, vector<128x512xbf16>, vector<1x512xf32> -> vector<1x512xf32>
    %186 = arith.addf %42, %185 : vector<1x512xf32>
    %187 = math.tanh %186 : vector<1x512xf32>
    %188 = vector.extract_strided_slice %187 {offsets = [0, 0], sizes = [1, 128], strides = [1, 1]} : vector<1x512xf32> to vector<1x128xf32>
    %cst_65 = arith.constant 1.000000e+00 : f32
    %189 = vector.broadcast %cst_65 : f32 to vector<1x128xf32>
    %190 = arith.addf %188, %189 : vector<1x128xf32>
    %cst_66 = arith.constant 5.000000e-01 : f32
    %191 = vector.broadcast %cst_66 : f32 to vector<1x128xf32>
    %192 = arith.mulf %191, %190 : vector<1x128xf32>
    %193 = vector.extract_strided_slice %187 {offsets = [0, 128], sizes = [1, 128], strides = [1, 1]} : vector<1x512xf32> to vector<1x128xf32>
    %cst_67 = arith.constant 1.000000e+00 : f32
    %194 = vector.broadcast %cst_67 : f32 to vector<1x128xf32>
    %195 = arith.addf %193, %194 : vector<1x128xf32>
    %cst_68 = arith.constant 5.000000e-01 : f32
    %196 = vector.broadcast %cst_68 : f32 to vector<1x128xf32>
    %197 = arith.mulf %196, %195 : vector<1x128xf32>
    %198 = vector.extract_strided_slice %187 {offsets = [0, 256], sizes = [1, 128], strides = [1, 1]} : vector<1x512xf32> to vector<1x128xf32>
    %199 = vector.extract_strided_slice %187 {offsets = [0, 384], sizes = [1, 128], strides = [1, 1]} : vector<1x512xf32> to vector<1x128xf32>
    %cst_69 = arith.constant 1.000000e+00 : f32
    %200 = vector.broadcast %cst_69 : f32 to vector<1x128xf32>
    %201 = arith.addf %199, %200 : vector<1x128xf32>
    %cst_70 = arith.constant 5.000000e-01 : f32
    %202 = vector.broadcast %cst_70 : f32 to vector<1x128xf32>
    %203 = arith.mulf %202, %201 : vector<1x128xf32>
    %204 = arith.mulf %197, %181 : vector<1x128xf32>
    %205 = arith.mulf %192, %198 : vector<1x128xf32>
    %206 = arith.addf %204, %205 : vector<1x128xf32>
    %207 = math.tanh %206 : vector<1x128xf32>
    %208 = arith.mulf %203, %207 : vector<1x128xf32>
    %209 = arith.truncf %208 : vector<1x128xf32> to vector<1x128xbf16>
    %cst_71 = arith.constant dense<0.000000e+00> : vector<1x512xf32>
    %210 = tpu.matmul %209, %0, %cst_71 {dimension_numbers = #tpu.dot_dimension_numbers<[1], [0], [0], [1], [0, 0, 1, 1], [], []>} : vector<1x128xbf16>, vector<128x512xbf16>, vector<1x512xf32> -> vector<1x512xf32>
    %211 = arith.addf %49, %210 : vector<1x512xf32>
    %212 = math.tanh %211 : vector<1x512xf32>
    %213 = vector.extract_strided_slice %212 {offsets = [0, 0], sizes = [1, 128], strides = [1, 1]} : vector<1x512xf32> to vector<1x128xf32>
    %cst_72 = arith.constant 1.000000e+00 : f32
    %214 = vector.broadcast %cst_72 : f32 to vector<1x128xf32>
    %215 = arith.addf %213, %214 : vector<1x128xf32>
    %cst_73 = arith.constant 5.000000e-01 : f32
    %216 = vector.broadcast %cst_73 : f32 to vector<1x128xf32>
    %217 = arith.mulf %216, %215 : vector<1x128xf32>
    %218 = vector.extract_strided_slice %212 {offsets = [0, 128], sizes = [1, 128], strides = [1, 1]} : vector<1x512xf32> to vector<1x128xf32>
    %cst_74 = arith.constant 1.000000e+00 : f32
    %219 = vector.broadcast %cst_74 : f32 to vector<1x128xf32>
    %220 = arith.addf %218, %219 : vector<1x128xf32>
    %cst_75 = arith.constant 5.000000e-01 : f32
    %221 = vector.broadcast %cst_75 : f32 to vector<1x128xf32>
    %222 = arith.mulf %221, %220 : vector<1x128xf32>
    %223 = vector.extract_strided_slice %212 {offsets = [0, 256], sizes = [1, 128], strides = [1, 1]} : vector<1x512xf32> to vector<1x128xf32>
    %224 = vector.extract_strided_slice %212 {offsets = [0, 384], sizes = [1, 128], strides = [1, 1]} : vector<1x512xf32> to vector<1x128xf32>
    %cst_76 = arith.constant 1.000000e+00 : f32
    %225 = vector.broadcast %cst_76 : f32 to vector<1x128xf32>
    %226 = arith.addf %224, %225 : vector<1x128xf32>
    %cst_77 = arith.constant 5.000000e-01 : f32
    %227 = vector.broadcast %cst_77 : f32 to vector<1x128xf32>
    %228 = arith.mulf %227, %226 : vector<1x128xf32>
    %229 = arith.mulf %222, %206 : vector<1x128xf32>
    %230 = arith.mulf %217, %223 : vector<1x128xf32>
    %231 = arith.addf %229, %230 : vector<1x128xf32>
    %232 = math.tanh %231 : vector<1x128xf32>
    %233 = arith.mulf %228, %232 : vector<1x128xf32>
    %234 = arith.truncf %233 : vector<1x128xf32> to vector<1x128xbf16>
    %cst_78 = arith.constant dense<0.000000e+00> : vector<1x512xf32>
    %235 = tpu.matmul %234, %0, %cst_78 {dimension_numbers = #tpu.dot_dimension_numbers<[1], [0], [0], [1], [0, 0, 1, 1], [], []>} : vector<1x128xbf16>, vector<128x512xbf16>, vector<1x512xf32> -> vector<1x512xf32>
    %236 = arith.addf %56, %235 : vector<1x512xf32>
    %237 = math.tanh %236 : vector<1x512xf32>
    %238 = vector.extract_strided_slice %237 {offsets = [0, 0], sizes = [1, 128], strides = [1, 1]} : vector<1x512xf32> to vector<1x128xf32>
    %cst_79 = arith.constant 1.000000e+00 : f32
    %239 = vector.broadcast %cst_79 : f32 to vector<1x128xf32>
    %240 = arith.addf %238, %239 : vector<1x128xf32>
    %cst_80 = arith.constant 5.000000e-01 : f32
    %241 = vector.broadcast %cst_80 : f32 to vector<1x128xf32>
    %242 = arith.mulf %241, %240 : vector<1x128xf32>
    %243 = vector.extract_strided_slice %237 {offsets = [0, 128], sizes = [1, 128], strides = [1, 1]} : vector<1x512xf32> to vector<1x128xf32>
    %cst_81 = arith.constant 1.000000e+00 : f32
    %244 = vector.broadcast %cst_81 : f32 to vector<1x128xf32>
    %245 = arith.addf %243, %244 : vector<1x128xf32>
    %cst_82 = arith.constant 5.000000e-01 : f32
    %246 = vector.broadcast %cst_82 : f32 to vector<1x128xf32>
    %247 = arith.mulf %246, %245 : vector<1x128xf32>
    %248 = vector.extract_strided_slice %237 {offsets = [0, 256], sizes = [1, 128], strides = [1, 1]} : vector<1x512xf32> to vector<1x128xf32>
    %249 = vector.extract_strided_slice %237 {offsets = [0, 384], sizes = [1, 128], strides = [1, 1]} : vector<1x512xf32> to vector<1x128xf32>
    %cst_83 = arith.constant 1.000000e+00 : f32
    %250 = vector.broadcast %cst_83 : f32 to vector<1x128xf32>
    %251 = arith.addf %249, %250 : vector<1x128xf32>
    %cst_84 = arith.constant 5.000000e-01 : f32
    %252 = vector.broadcast %cst_84 : f32 to vector<1x128xf32>
    %253 = arith.mulf %252, %251 : vector<1x128xf32>
    %254 = arith.mulf %247, %231 : vector<1x128xf32>
    %255 = arith.mulf %242, %248 : vector<1x128xf32>
    %256 = arith.addf %254, %255 : vector<1x128xf32>
    %257 = math.tanh %256 : vector<1x128xf32>
    %258 = arith.mulf %253, %257 : vector<1x128xf32>
    %259 = tpu.concatenate %83, %108, %133, %158, %183, %208, %233, %258 in 0 : vector<1x128xf32>, vector<1x128xf32>, vector<1x128xf32>, vector<1x128xf32>, vector<1x128xf32>, vector<1x128xf32>, vector<1x128xf32>, vector<1x128xf32> -> vector<8x128xf32>
    %c0_85 = arith.constant 0 : index
    %c0_86 = arith.constant 0 : index
    %260 = vector.load %arg7[%c0_85, %c0_86] : memref<8x128xf32, #tpu.memory_space<vmem>>, vector<8x128xf32>
    tpu.vector_store %arg7[%c0_85, %c0_86], %259 {strides = array<i32>} : memref<8x128xf32, #tpu.memory_space<vmem>>, vector<8x128xf32>,
    %c0_87 = arith.constant 0 : index
    %c0_88 = arith.constant 0 : index
    %261 = vector.load %arg8[%c0_87, %c0_88] : memref<1x128xf32, #tpu.memory_space<vmem>>, vector<1x128xf32>
    tpu.vector_store %arg8[%c0_87, %c0_88], %258 {strides = array<i32>} : memref<1x128xf32, #tpu.memory_space<vmem>>, vector<1x128xf32>,
    %c0_89 = arith.constant 0 : index
    %c0_90 = arith.constant 0 : index
    %262 = vector.load %arg9[%c0_89, %c0_90] : memref<1x128xf32, #tpu.memory_space<vmem>>, vector<1x128xf32>
    tpu.vector_store %arg9[%c0_89, %c0_90], %256 {strides = array<i32>} : memref<1x128xf32, #tpu.memory_space<vmem>>, vector<1x128xf32>,
    return
  }
}

</mosaic_0001>

<llo_original>
// kernel: lstm_component_forward.1
$region0: #{lstm_component_forward.1}
  #allocation0 [shape = 'u32[]', space=smem, size = 0x4, offset = 0x4, fixed_abs, tag = 'smem constant byte address 0x4 - core index']
  #allocation1 [shape = 'u32[72,128]{1,0:T(1,128)}', space=vmem, size = 0x9000, scoped, tag = 'internal scratch']
  %s0 = inlined_call_operand.vmem [shape: s32[8], index: 0, kind: input, shape index: {}]
  %s1 = inlined_call_operand.vmem [shape: s32[8], index: 1, kind: input, shape index: {}]
  %s2 = inlined_call_operand.hbm [shape: f32[40,512], index: 2, kind: input, shape index: {}]
  %s3 = inlined_call_operand.hbm [shape: f32[12,512], index: 3, kind: input, shape index: {}]
  %s4 = inlined_call_operand.hbm [shape: bf16[128,512], index: 4, kind: input, shape index: {}]
  %s5 = inlined_call_operand.vmem [shape: f32[1,128], index: 5, kind: input, shape index: {}]
  %s6 = inlined_call_operand.vmem [shape: f32[1,128], index: 6, kind: input, shape index: {}]
  %s7 = inlined_call_operand.hbm [shape: f32[8,128], index: 7, kind: output, shape index: {0}]
  %s8 = inlined_call_operand.hbm [shape: f32[1,128], index: 8, kind: output, shape index: {1}]
  %s9 = inlined_call_operand.hbm [shape: f32[1,128], index: 9, kind: output, shape index: {2}]
  %10 = xla_tuple %s7, %s8, %s9
  %s11 = sld [smem:[#allocation0]]
  $region74: #{lstm_component_forward.1} parent=0
    _
  %s13 = ssub.s32 1, %s11
  %s14 = scalar_select 0, %s13, %s11
  $region1: #{lstm_component_forward.1} parent=0
    #allocation2 [shape = 'u8[512]{0}', space=smem, size = 0x200, scoped, tag = 'input window, operand 0, single buffered']
    #allocation3 [shape = 's32[1]{0}', space=sflag, size = 0x4, scoped, tag = 'scoped memory for lstm_component_forward.1']
    #allocation4 [shape = 's32[1]{0}', space=sflag, size = 0x4, scoped, tag = 'scoped memory for lstm_component_forward.1']
    #allocation5 [shape = 's32[1]{0}', space=sflag, size = 0x4, scoped, tag = 'scoped memory for lstm_component_forward.1']
    #allocation6 [shape = 'u8[512]{0}', space=smem, size = 0x200, scoped, tag = 'input window, operand 1, single buffered']
    #allocation7 [shape = 's32[1]{0}', space=sflag, size = 0x4, scoped, tag = 'scoped memory for lstm_component_forward.1']
    #allocation8 [shape = 'u8[81920]{0}', space=vmem, size = 0x14000, scoped, tag = 'input window, operand 2, single buffered']
    #allocation9 [shape = 'u8[32768]{0}', space=vmem, size = 0x8000, scoped, tag = 'input window, operand 3, single buffered']
    #allocation10 [shape = 's32[1]{0}', space=sflag, size = 0x4, scoped, tag = 'scoped memory for lstm_component_forward.1']
    #allocation11 [shape = 'u8[131072]{0}', space=vmem, size = 0x20000, scoped, tag = 'input window, operand 4, single buffered']
    #allocation12 [shape = 'u8[4096]{0}', space=vmem, size = 0x1000, scoped, tag = 'output window, operand 0, single buffered']
    #allocation13 [shape = 'u8[512]{0}', space=vmem, size = 0x400, scoped, tag = 'output window, operand 1, single buffered']
    #allocation14 [shape = 's32[1]{0}', space=sflag, size = 0x4, scoped, tag = 'scoped memory for lstm_component_forward.1']
    #allocation15 [shape = 'u8[512]{0}', space=vmem, size = 0x400, scoped, tag = 'output window, operand 2, single buffered']
    %15 = vsyncpa [#allocation5], 0
    %16 = vsyncpa [#allocation7], 0
    %17 = vsyncpa [#allocation3], 0
    %18 = vsyncpa [#allocation10], 0
    %19 = vsyncpa [#allocation4], 0
    %20 = vsyncpa [#allocation14], 0
    // Predicated region
    $region2: #{lstm_component_forward.1} parent=1 // pred_check
      _
    $region3: #{lstm_component_forward.1} parent=1 // pred_check_branch
      %22 = sbr.rel (0) target = $region5
    $region4: #{lstm_component_forward.1} parent=1 // pred_region
      %24 = vsyncadd [#allocation5], 0
      %s26 = sshll.u32 %s0, 4
      %s27 = int_to_ptr.vmem [resolvable:$true] %s26
      %29 = dma.vmem_to_smem %s27, 16, [#allocation2], [#allocation5]
    $region5: #{lstm_component_forward.1} parent=1 // pred_fallthru
      _
    // Predicated region
    $region6: #{lstm_component_forward.1} parent=1 // pred_check
      _
    $region7: #{lstm_component_forward.1} parent=1 // pred_check_branch
      %31 = sbr.rel (0) target = $region9
    $region8: #{lstm_component_forward.1} parent=1 // pred_region
      %33 = vsyncadd [#allocation7], 0
      %s35 = sshll.u32 %s1, 4
      %s36 = int_to_ptr.vmem [resolvable:$true] %s35
      %38 = dma.vmem_to_smem %s36, 16, [#allocation6], [#allocation7]
    $region9: #{lstm_component_forward.1} parent=1 // pred_fallthru
      _
    // Predicated region
    $region10: #{lstm_component_forward.1} parent=1 // pred_check
      _
    $region11: #{lstm_component_forward.1} parent=1 // pred_check_branch
      %40 = sbr.rel (0) target = $region13
    $region12: #{lstm_component_forward.1} parent=1 // pred_region
      %42 = vsyncadd [#allocation3], 0
      %s43 = sshll.u32 %s2, 4
      %s44 = int_to_ptr.hbm [resolvable:$true] %s43
      %s45 = sshll.u32 [#allocation8], 4
      %s46 = int_to_ptr.vmem [resolvable:$true] %s45
      %51 = dma.hbm_to_vmem [thread:$0]  %s44, 2560, %s46, [#allocation3], 512, 512, 32
    $region13: #{lstm_component_forward.1} parent=1 // pred_fallthru
      _
    // Predicated region
    $region14: #{lstm_component_forward.1} parent=1 // pred_check
      _
    $region15: #{lstm_component_forward.1} parent=1 // pred_check_branch
      %53 = sbr.rel (0) target = $region17
    $region16: #{lstm_component_forward.1} parent=1 // pred_region
      %55 = vsyncadd [#allocation10], 0
      %s56 = sshll.u32 %s3, 4
      %s57 = int_to_ptr.hbm [resolvable:$true] %s56
      %s58 = sshll.u32 [#allocation9], 4
      %s59 = int_to_ptr.vmem [resolvable:$true] %s58
      %64 = dma.hbm_to_vmem [thread:$0]  %s57, 1024, %s59, [#allocation10], 512, 512, 32
    $region17: #{lstm_component_forward.1} parent=1 // pred_fallthru
      _
    // Predicated region
    $region18: #{lstm_component_forward.1} parent=1 // pred_check
      _
    $region19: #{lstm_component_forward.1} parent=1 // pred_check_branch
      %66 = sbr.rel (0) target = $region21
    $region20: #{lstm_component_forward.1} parent=1 // pred_region
      %68 = vsyncadd [#allocation10], 0
      %s69 = sshll.u32 %s4, 4
      %s70 = int_to_ptr.hbm [resolvable:$true] %s69
      %s71 = sshll.u32 [#allocation11], 4
      %s72 = int_to_ptr.vmem [resolvable:$true] %s71
      %77 = dma.hbm_to_vmem [thread:$0]  %s70, 4096, %s72, [#allocation10], 256, 256, 16
    $region21: #{lstm_component_forward.1} parent=1 // pred_fallthru
      _
    // Predicated region
    $region22: #{lstm_component_forward.1} parent=1 // pred_check
      _
    $region23: #{lstm_component_forward.1} parent=1 // pred_check_branch
      %79 = sbr.rel (0) target = $region25
    $region24: #{lstm_component_forward.1} parent=1 // pred_region
      _
    $region25: #{lstm_component_forward.1} parent=1 // pred_fallthru
      _
    // Predicated region
    $region26: #{lstm_component_forward.1} parent=1 // pred_check
      _
    $region27: #{lstm_component_forward.1} parent=1 // pred_check_branch
      %81 = sbr.rel (0) target = $region29
    $region28: #{lstm_component_forward.1} parent=1 // pred_region
      _
    $region29: #{lstm_component_forward.1} parent=1 // pred_fallthru
      _
    // Predicated region
    $region30: #{lstm_component_forward.1} parent=1 // pred_check
      _
    $region31: #{lstm_component_forward.1} parent=1 // pred_check_branch
      %83 = sbr.rel (0) target = $region33
    $region32: #{lstm_component_forward.1} parent=1 // pred_region
      %85 = dma.done [#allocation5], 16
    $region33: #{lstm_component_forward.1} parent=1 // pred_fallthru
      _
    // Predicated region
    $region34: #{lstm_component_forward.1} parent=1 // pred_check
      _
    $region35: #{lstm_component_forward.1} parent=1 // pred_check_branch
      %87 = sbr.rel (0) target = $region37
    $region36: #{lstm_component_forward.1} parent=1 // pred_region
      %89 = dma.done [#allocation7], 16
    $region37: #{lstm_component_forward.1} parent=1 // pred_fallthru
      _
    // Predicated region
    $region38: #{lstm_component_forward.1} parent=1 // pred_check
      _
    $region39: #{lstm_component_forward.1} parent=1 // pred_check_branch
      %91 = sbr.rel (0) target = $region41
    $region40: #{lstm_component_forward.1} parent=1 // pred_region
      %93 = dma.done [#allocation3], 2560
    $region41: #{lstm_component_forward.1} parent=1 // pred_fallthru
      _
    // Predicated region
    $region42: #{lstm_component_forward.1} parent=1 // pred_check
      _
    $region43: #{lstm_component_forward.1} parent=1 // pred_check_branch
      %95 = sbr.rel (0) target = $region45
    $region44: #{lstm_component_forward.1} parent=1 // pred_region
      %97 = dma.done [#allocation10], 1024
    $region45: #{lstm_component_forward.1} parent=1 // pred_fallthru
      _
    // Predicated region
    $region46: #{lstm_component_forward.1} parent=1 // pred_check
      _
    $region47: #{lstm_component_forward.1} parent=1 // pred_check_branch
      %99 = sbr.rel (0) target = $region49
    $region48: #{lstm_component_forward.1} parent=1 // pred_region
      %101 = dma.done [#allocation10], 4096
    $region49: #{lstm_component_forward.1} parent=1 // pred_fallthru
      _
    %102 = sfence
    %v103 = vld [vmem:[#allocation11] sm:$0xff]
    %v104 = vld [vmem:[#allocation11 + $0x8] sm:$0xff]
    %v105 = vld [vmem:[#allocation11 + $0x10] sm:$0xff]
    %v106 = vld [vmem:[#allocation11 + $0x18] sm:$0xff]
    %v107 = vld [vmem:[#allocation11 + $0x20] sm:$0xff]
    %v108 = vld [vmem:[#allocation11 + $0x28] sm:$0xff]
    %v109 = vld [vmem:[#allocation11 + $0x30] sm:$0xff]
    %v110 = vld [vmem:[#allocation11 + $0x38] sm:$0xff]
    %v111 = vld [vmem:[#allocation11 + $0x40] sm:$0xff]
    %v112 = vld [vmem:[#allocation11 + $0x48] sm:$0xff]
    %v113 = vld [vmem:[#allocation11 + $0x50] sm:$0xff]
    %v114 = vld [vmem:[#allocation11 + $0x58] sm:$0xff]
    %v115 = vld [vmem:[#allocation11 + $0x60] sm:$0xff]
    %v116 = vld [vmem:[#allocation11 + $0x68] sm:$0xff]
    %v117 = vld [vmem:[#allocation11 + $0x70] sm:$0xff]
    %v118 = vld [vmem:[#allocation11 + $0x78] sm:$0xff]
    %v119 = vld [vmem:[#allocation11 + $0x80] sm:$0xff]
    %v120 = vld [vmem:[#allocation11 + $0x88] sm:$0xff]
    %v121 = vld [vmem:[#allocation11 + $0x90] sm:$0xff]
    %v122 = vld [vmem:[#allocation11 + $0x98] sm:$0xff]
    %v123 = vld [vmem:[#allocation11 + $0xa0] sm:$0xff]
    %v124 = vld [vmem:[#allocation11 + $0xa8] sm:$0xff]
    %v125 = vld [vmem:[#allocation11 + $0xb0] sm:$0xff]
    %v126 = vld [vmem:[#allocation11 + $0xb8] sm:$0xff]
    %v127 = vld [vmem:[#allocation11 + $0xc0] sm:$0xff]
    %v128 = vld [vmem:[#allocation11 + $0xc8] sm:$0xff]
    %v129 = vld [vmem:[#allocation11 + $0xd0] sm:$0xff]
    %v130 = vld [vmem:[#allocation11 + $0xd8] sm:$0xff]
    %v131 = vld [vmem:[#allocation11 + $0xe0] sm:$0xff]
    %v132 = vld [vmem:[#allocation11 + $0xe8] sm:$0xff]
    %v133 = vld [vmem:[#allocation11 + $0xf0] sm:$0xff]
    %v134 = vld [vmem:[#allocation11 + $0xf8] sm:$0xff]
    %s135 = sld [smem:[#allocation2]]
    %s136 = sshra.s32 %s135, 3
    %s137 = sand.u32 %s135, 7
    %s138 = sshra.s32 %s135, 3
    %s139 = sand.u32 %s135, 7
    %s140 = smul.u32 %s136, 4
    %s141 = smul.u32 %s140, 8
    %s142 = sadd.s32 %s141, %s139
    %s143 = scalar_lea.vmem [#allocation8], %s142
    %v144 = vld [vmem:[%s143] ss:$8 sm:$0xf]
    %s145 = sld [smem:[#allocation6]]
    %s146 = sshra.s32 %s145, 3
    %s147 = sand.u32 %s145, 7
    %s148 = sshra.s32 %s145, 3
    %s149 = sand.u32 %s145, 7
    %s150 = smul.u32 %s146, 4
    %s151 = smul.u32 %s150, 8
    %s152 = sadd.s32 %s151, %s149
    %s153 = scalar_lea.vmem [#allocation9], %s152
    %v154 = vld [vmem:[%s153] ss:$8 sm:$0xf]
    %v155 = vadd.f32 %v144, %v154
    %s156 = sld [smem:[#allocation2 + $0x1]]
    %s157 = sshra.s32 %s156, 3
    %s158 = sand.u32 %s156, 7
    %s159 = sshra.s32 %s156, 3
    %s160 = sand.u32 %s156, 7
    %s161 = smul.u32 %s157, 4
    %s162 = smul.u32 %s161, 8
    %s163 = sadd.s32 %s162, %s160
    %s164 = scalar_lea.vmem [#allocation8], %s163
    %v165 = vld [vmem:[%s164] ss:$8 sm:$0xf]
    %s166 = sld [smem:[#allocation6 + $0x1]]
    %s167 = sshra.s32 %s166, 3
    %s168 = sand.u32 %s166, 7
    %s169 = sshra.s32 %s166, 3
    %s170 = sand.u32 %s166, 7
    %s171 = smul.u32 %s167, 4
    %s172 = smul.u32 %s171, 8
    %s173 = sadd.s32 %s172, %s170
    %s174 = scalar_lea.vmem [#allocation9], %s173
    %v175 = vld [vmem:[%s174] ss:$8 sm:$0xf]
    %v176 = vadd.f32 %v165, %v175
    %s177 = sld [smem:[#allocation2 + $0x2]]
    %s178 = sshra.s32 %s177, 3
    %s179 = sand.u32 %s177, 7
    %s180 = sshra.s32 %s177, 3
    %s181 = sand.u32 %s177, 7
    %s182 = smul.u32 %s178, 4
    %s183 = smul.u32 %s182, 8
    %s184 = sadd.s32 %s183, %s181
    %s185 = scalar_lea.vmem [#allocation8], %s184
    %v186 = vld [vmem:[%s185] ss:$8 sm:$0xf]
    %s187 = sld [smem:[#allocation6 + $0x2]]
    %s188 = sshra.s32 %s187, 3
    %s189 = sand.u32 %s187, 7
    %s190 = sshra.s32 %s187, 3
    %s191 = sand.u32 %s187, 7
    %s192 = smul.u32 %s188, 4
    %s193 = smul.u32 %s192, 8
    %s194 = sadd.s32 %s193, %s191
    %s195 = scalar_lea.vmem [#allocation9], %s194
    %v196 = vld [vmem:[%s195] ss:$8 sm:$0xf]
    %v197 = vadd.f32 %v186, %v196
    %s198 = sld [smem:[#allocation2 + $0x3]]
    %s199 = sshra.s32 %s198, 3
    %s200 = sand.u32 %s198, 7
    %s201 = sshra.s32 %s198, 3
    %s202 = sand.u32 %s198, 7
    %s203 = smul.u32 %s199, 4
    %s204 = smul.u32 %s203, 8
    %s205 = sadd.s32 %s204, %s202
    %s206 = scalar_lea.vmem [#allocation8], %s205
    %v207 = vld [vmem:[%s206] ss:$8 sm:$0xf]
    %s208 = sld [smem:[#allocation6 + $0x3]]
    %s209 = sshra.s32 %s208, 3
    %s210 = sand.u32 %s208, 7
    %s211 = sshra.s32 %s208, 3
    %s212 = sand.u32 %s208, 7
    %s213 = smul.u32 %s209, 4
    %s214 = smul.u32 %s213, 8
    %s215 = sadd.s32 %s214, %s212
    %s216 = scalar_lea.vmem [#allocation9], %s215
    %v217 = vld [vmem:[%s216] ss:$8 sm:$0xf]
    %v218 = vadd.f32 %v207, %v217
    %s219 = sld [smem:[#allocation2 + $0x4]]
    %s220 = sshra.s32 %s219, 3
    %s221 = sand.u32 %s219, 7
    %s222 = sshra.s32 %s219, 3
    %s223 = sand.u32 %s219, 7
    %s224 = smul.u32 %s220, 4
    %s225 = smul.u32 %s224, 8
    %s226 = sadd.s32 %s225, %s223
    %s227 = scalar_lea.vmem [#allocation8], %s226
    %v228 = vld [vmem:[%s227] ss:$8 sm:$0xf]
    %s229 = sld [smem:[#allocation6 + $0x4]]
    %s230 = sshra.s32 %s229, 3
    %s231 = sand.u32 %s229, 7
    %s232 = sshra.s32 %s229, 3
    %s233 = sand.u32 %s229, 7
    %s234 = smul.u32 %s230, 4
    %s235 = smul.u32 %s234, 8
    %s236 = sadd.s32 %s235, %s233
    %s237 = scalar_lea.vmem [#allocation9], %s236
    %v238 = vld [vmem:[%s237] ss:$8 sm:$0xf]
    %v239 = vadd.f32 %v228, %v238
    %s240 = sld [smem:[#allocation2 + $0x5]]
    %s241 = sshra.s32 %s240, 3
    %s242 = sand.u32 %s240, 7
    %s243 = sshra.s32 %s240, 3
    %s244 = sand.u32 %s240, 7
    %s245 = smul.u32 %s241, 4
    %s246 = smul.u32 %s245, 8
    %s247 = sadd.s32 %s246, %s244
    %s248 = scalar_lea.vmem [#allocation8], %s247
    %v249 = vld [vmem:[%s248] ss:$8 sm:$0xf]
    %s250 = sld [smem:[#allocation6 + $0x5]]
    %s251 = sshra.s32 %s250, 3
    %s252 = sand.u32 %s250, 7
    %s253 = sshra.s32 %s250, 3
    %s254 = sand.u32 %s250, 7
    %s255 = smul.u32 %s251, 4
    %s256 = smul.u32 %s255, 8
    %s257 = sadd.s32 %s256, %s254
    %s258 = scalar_lea.vmem [#allocation9], %s257
    %v259 = vld [vmem:[%s258] ss:$8 sm:$0xf]
    %v260 = vadd.f32 %v249, %v259
    %s261 = sld [smem:[#allocation2 + $0x6]]
    %s262 = sshra.s32 %s261, 3
    %s263 = sand.u32 %s261, 7
    %s264 = sshra.s32 %s261, 3
    %s265 = sand.u32 %s261, 7
    %s266 = smul.u32 %s262, 4
    %s267 = smul.u32 %s266, 8
    %s268 = sadd.s32 %s267, %s265
    %s269 = scalar_lea.vmem [#allocation8], %s268
    %v270 = vld [vmem:[%s269] ss:$8 sm:$0xf]
    %s271 = sld [smem:[#allocation6 + $0x6]]
    %s272 = sshra.s32 %s271, 3
    %s273 = sand.u32 %s271, 7
    %s274 = sshra.s32 %s271, 3
    %s275 = sand.u32 %s271, 7
    %s276 = smul.u32 %s272, 4
    %s277 = smul.u32 %s276, 8
    %s278 = sadd.s32 %s277, %s275
    %s279 = scalar_lea.vmem [#allocation9], %s278
    %v280 = vld [vmem:[%s279] ss:$8 sm:$0xf]
    %v281 = vadd.f32 %v270, %v280
    %s282 = sld [smem:[#allocation2 + $0x7]]
    %s283 = sshra.s32 %s282, 3
    %s284 = sand.u32 %s282, 7
    %s285 = sshra.s32 %s282, 3
    %s286 = sand.u32 %s282, 7
    %s287 = smul.u32 %s283, 4
    %s288 = smul.u32 %s287, 8
    %s289 = sadd.s32 %s288, %s286
    %s290 = scalar_lea.vmem [#allocation8], %s289
    %v291 = vld [vmem:[%s290] ss:$8 sm:$0xf]
    %s292 = sld [smem:[#allocation6 + $0x7]]
    %s293 = sshra.s32 %s292, 3
    %s294 = sand.u32 %s292, 7
    %s295 = sshra.s32 %s292, 3
    %s296 = sand.u32 %s292, 7
    %s297 = smul.u32 %s293, 4
    %s298 = smul.u32 %s297, 8
    %s299 = sadd.s32 %s298, %s296
    %s300 = scalar_lea.vmem [#allocation9], %s299
    %v301 = vld [vmem:[%s300] ss:$8 sm:$0xf]
    %v302 = vadd.f32 %v291, %v301
    %v303 = vld [vmem:[%s5] sm:$0x1]
    %v304 = vld [vmem:[%s6] sm:$0x1]
    %v305 = vpack.c.bf16 %v303, %v303
    %v338 = vunpack.c.l.b16 %v103
    %v339 = vunpack.c.h.b16 %v103
    %v340 = vunpack.c.l.b16 %v104
    %v341 = vunpack.c.h.b16 %v104
    %v342 = vunpack.c.l.b16 %v105
    %v343 = vunpack.c.h.b16 %v105
    %v344 = vunpack.c.l.b16 %v106
    %v345 = vunpack.c.h.b16 %v106
    %v346 = vunpack.c.l.b16 %v107
    %v347 = vunpack.c.h.b16 %v107
    %v348 = vunpack.c.l.b16 %v108
    %v349 = vunpack.c.h.b16 %v108
    %v350 = vunpack.c.l.b16 %v109
    %v351 = vunpack.c.h.b16 %v109
    %v352 = vunpack.c.l.b16 %v110
    %v353 = vunpack.c.h.b16 %v110
    %v354 = vunpack.c.l.b16 %v111
    %v355 = vunpack.c.h.b16 %v111
    %v356 = vunpack.c.l.b16 %v112
    %v357 = vunpack.c.h.b16 %v112
    %v358 = vunpack.c.l.b16 %v113
    %v359 = vunpack.c.h.b16 %v113
    %v360 = vunpack.c.l.b16 %v114
    %v361 = vunpack.c.h.b16 %v114
    %v362 = vunpack.c.l.b16 %v115
    %v363 = vunpack.c.h.b16 %v115
    %v364 = vunpack.c.l.b16 %v116
    %v365 = vunpack.c.h.b16 %v116
    %v366 = vunpack.c.l.b16 %v117
    %v367 = vunpack.c.h.b16 %v117
    %v368 = vunpack.c.l.b16 %v118
    %v369 = vunpack.c.h.b16 %v118
    %v370 = vunpack.c.l.b16 %v119
    %v371 = vunpack.c.h.b16 %v119
    %v372 = vunpack.c.l.b16 %v120
    %v373 = vunpack.c.h.b16 %v120
    %v374 = vunpack.c.l.b16 %v121
    %v375 = vunpack.c.h.b16 %v121
    %v376 = vunpack.c.l.b16 %v122
    %v377 = vunpack.c.h.b16 %v122
    %v378 = vunpack.c.l.b16 %v123
    %v379 = vunpack.c.h.b16 %v123
    %v380 = vunpack.c.l.b16 %v124
    %v381 = vunpack.c.h.b16 %v124
    %v382 = vunpack.c.l.b16 %v125
    %v383 = vunpack.c.h.b16 %v125
    %v384 = vunpack.c.l.b16 %v126
    %v385 = vunpack.c.h.b16 %v126
    %v386 = vunpack.c.l.b16 %v127
    %v387 = vunpack.c.h.b16 %v127
    %v388 = vunpack.c.l.b16 %v128
    %v389 = vunpack.c.h.b16 %v128
    %v390 = vunpack.c.l.b16 %v129
    %v391 = vunpack.c.h.b16 %v129
    %v392 = vunpack.c.l.b16 %v130
    %v393 = vunpack.c.h.b16 %v130
    %v394 = vunpack.c.l.b16 %v131
    %v395 = vunpack.c.h.b16 %v131
    %v396 = vunpack.c.l.b16 %v132
    %v397 = vunpack.c.h.b16 %v132
    %v398 = vunpack.c.l.b16 %v133
    %v399 = vunpack.c.h.b16 %v133
    %v400 = vunpack.c.l.b16 %v134
    %v401 = vunpack.c.h.b16 %v134
    %v402 = vpack.c.b16 %v342, %v338
    %v403 = vpack.c.b16 %v343, %v339
    %v404 = vpack.c.b16 %v344, %v340
    %v405 = vpack.c.b16 %v345, %v341
    %v406 = vpack.c.b16 %v350, %v346
    %v407 = vpack.c.b16 %v351, %v347
    %v408 = vpack.c.b16 %v352, %v348
    %v409 = vpack.c.b16 %v353, %v349
    %v410 = vpack.c.b16 %v358, %v354
    %v411 = vpack.c.b16 %v359, %v355
    %v412 = vpack.c.b16 %v360, %v356
    %v413 = vpack.c.b16 %v361, %v357
    %v414 = vpack.c.b16 %v366, %v362
    %v415 = vpack.c.b16 %v367, %v363
    %v416 = vpack.c.b16 %v368, %v364
    %v417 = vpack.c.b16 %v369, %v365
    %v418 = vpack.c.b16 %v374, %v370
    %v419 = vpack.c.b16 %v375, %v371
    %v420 = vpack.c.b16 %v376, %v372
    %v421 = vpack.c.b16 %v377, %v373
    %v422 = vpack.c.b16 %v382, %v378
    %v423 = vpack.c.b16 %v383, %v379
    %v424 = vpack.c.b16 %v384, %v380
    %v425 = vpack.c.b16 %v385, %v381
    %v426 = vpack.c.b16 %v390, %v386
    %v427 = vpack.c.b16 %v391, %v387
    %v428 = vpack.c.b16 %v392, %v388
    %v429 = vpack.c.b16 %v393, %v389
    %v430 = vpack.c.b16 %v398, %v394
    %v431 = vpack.c.b16 %v399, %v395
    %v432 = vpack.c.b16 %v400, %v396
    %v433 = vpack.c.b16 %v401, %v397
    %466 = vmatpush.bf16.msra.mxu0 %v430
    %467 = vmatpush.bf16.msra.mxu0 %v426
    %468 = vmatpush.bf16.msra.mxu0 %v422
    %469 = vmatpush.bf16.msra.mxu0 %v418
    %470 = vmatpush.bf16.msra.mxu0 %v414
    %471 = vmatpush.bf16.msra.mxu0 %v410
    %472 = vmatpush.bf16.msra.mxu0 %v406
    %473 = vmatpush.bf16.msra.mxu0 %v402
    %474 = vmatmul.bf16.gmra.mxu0 %v305
    %v475 = vpop.f32.mrf.mxu0
    %v476 = vadd.f32 0.0, %v475
    %v477 = vpop.f32.mrf.mxu0
    %478 = vdwg.mxu0
    %479 = vmatpush.bf16.msra.mxu0 %v431
    %480 = vmatpush.bf16.msra.mxu0 %v427
    %481 = vmatpush.bf16.msra.mxu0 %v423
    %482 = vmatpush.bf16.msra.mxu0 %v419
    %483 = vmatpush.bf16.msra.mxu0 %v415
    %484 = vmatpush.bf16.msra.mxu0 %v411
    %485 = vmatpush.bf16.msra.mxu0 %v407
    %486 = vmatpush.bf16.msra.mxu0 %v403
    %487 = vmatmul.bf16.gmra.mxu0 %v305
    %v488 = vpop.f32.mrf.mxu0
    %v489 = vadd.f32 0.0, %v488
    %v490 = vpop.f32.mrf.mxu0
    %491 = vdwg.mxu0
    %492 = vmatpush.bf16.msra.mxu0 %v432
    %493 = vmatpush.bf16.msra.mxu0 %v428
    %494 = vmatpush.bf16.msra.mxu0 %v424
    %495 = vmatpush.bf16.msra.mxu0 %v420
    %496 = vmatpush.bf16.msra.mxu0 %v416
    %497 = vmatpush.bf16.msra.mxu0 %v412
    %498 = vmatpush.bf16.msra.mxu0 %v408
    %499 = vmatpush.bf16.msra.mxu0 %v404
    %500 = vmatmul.bf16.gmra.mxu0 %v305
    %v501 = vpop.f32.mrf.mxu0
    %v502 = vadd.f32 0.0, %v501
    %v503 = vpop.f32.mrf.mxu0
    %504 = vdwg.mxu0
    %505 = vmatpush.bf16.msra.mxu0 %v433
    %506 = vmatpush.bf16.msra.mxu0 %v429
    %507 = vmatpush.bf16.msra.mxu0 %v425
    %508 = vmatpush.bf16.msra.mxu0 %v421
    %509 = vmatpush.bf16.msra.mxu0 %v417
    %510 = vmatpush.bf16.msra.mxu0 %v413
    %511 = vmatpush.bf16.msra.mxu0 %v409
    %512 = vmatpush.bf16.msra.mxu0 %v405
    %513 = vmatmul.bf16.gmra.mxu0 %v305
    %v514 = vpop.f32.mrf.mxu0
    %v515 = vadd.f32 0.0, %v514
    %v516 = vpop.f32.mrf.mxu0
    %517 = vdwg.mxu0
    %v522 = vrot.slane %v489, 7
    %v523 = vrot.slane %v502, 6
    %v524 = vrot.slane %v515, 5
    %vm525 = vcmask 1040384
    %v526 = vsel %vm525, %v476, %v522
    %vm527 = vcmask 1042434
    %v528 = vsel %vm527, %v523, %v524
    %vm529 = vcmask 1041408
    %v530 = vsel %vm529, %v526, %v528
    %v532 = vadd.f32 %v155, %v530
    %v533 = vtanh.pop %v532
    %v534 = vadd.f32 %v533, 1.0
    %v535 = vmul.f32 %v534, 0.5
    %v537 = vrot.slane %v533, 1
    %v539 = vadd.f32 %v537, 1.0
    %v540 = vmul.f32 %v539, 0.5
    %v541 = vrot.slane %v533, 3
    %v543 = vadd.f32 %v541, 1.0
    %v544 = vmul.f32 %v543, 0.5
    %v545 = vmul.f32 %v540, %v304
    %v546 = vrot.slane %v533, 2
    %v548 = vmul.f32 %v535, %v546
    %v549 = vadd.f32 %v545, %v548
    %v550 = vtanh.pop %v549
    %v551 = vmul.f32 %v544, %v550
    %v552 = vpack.c.bf16 %v551, %v551
    %553 = vmatpush.bf16.msra.mxu0 %v430
    %554 = vmatpush.bf16.msra.mxu0 %v426
    %555 = vmatpush.bf16.msra.mxu0 %v422
    %556 = vmatpush.bf16.msra.mxu0 %v418
    %557 = vmatpush.bf16.msra.mxu0 %v414
    %558 = vmatpush.bf16.msra.mxu0 %v410
    %559 = vmatpush.bf16.msra.mxu0 %v406
    %560 = vmatpush.bf16.msra.mxu0 %v402
    %561 = vmatmul.bf16.gmra.mxu0 %v552
    %v562 = vpop.f32.mrf.mxu0
    %v563 = vadd.f32 0.0, %v562
    %v564 = vpop.f32.mrf.mxu0
    %565 = vdwg.mxu0
    %566 = vmatpush.bf16.msra.mxu0 %v431
    %567 = vmatpush.bf16.msra.mxu0 %v427
    %568 = vmatpush.bf16.msra.mxu0 %v423
    %569 = vmatpush.bf16.msra.mxu0 %v419
    %570 = vmatpush.bf16.msra.mxu0 %v415
    %571 = vmatpush.bf16.msra.mxu0 %v411
    %572 = vmatpush.bf16.msra.mxu0 %v407
    %573 = vmatpush.bf16.msra.mxu0 %v403
    %574 = vmatmul.bf16.gmra.mxu0 %v552
    %v575 = vpop.f32.mrf.mxu0
    %v576 = vadd.f32 0.0, %v575
    %v577 = vpop.f32.mrf.mxu0
    %578 = vdwg.mxu0
    %579 = vmatpush.bf16.msra.mxu0 %v432
    %580 = vmatpush.bf16.msra.mxu0 %v428
    %581 = vmatpush.bf16.msra.mxu0 %v424
    %582 = vmatpush.bf16.msra.mxu0 %v420
    %583 = vmatpush.bf16.msra.mxu0 %v416
    %584 = vmatpush.bf16.msra.mxu0 %v412
    %585 = vmatpush.bf16.msra.mxu0 %v408
    %586 = vmatpush.bf16.msra.mxu0 %v404
    %587 = vmatmul.bf16.gmra.mxu0 %v552
    %v588 = vpop.f32.mrf.mxu0
    %v589 = vadd.f32 0.0, %v588
    %v590 = vpop.f32.mrf.mxu0
    %591 = vdwg.mxu0
    %592 = vmatpush.bf16.msra.mxu0 %v433
    %593 = vmatpush.bf16.msra.mxu0 %v429
    %594 = vmatpush.bf16.msra.mxu0 %v425
    %595 = vmatpush.bf16.msra.mxu0 %v421
    %596 = vmatpush.bf16.msra.mxu0 %v417
    %597 = vmatpush.bf16.msra.mxu0 %v413
    %598 = vmatpush.bf16.msra.mxu0 %v409
    %599 = vmatpush.bf16.msra.mxu0 %v405
    %600 = vmatmul.bf16.gmra.mxu0 %v552
    %v601 = vpop.f32.mrf.mxu0
    %v602 = vadd.f32 0.0, %v601
    %v603 = vpop.f32.mrf.mxu0
    %604 = vdwg.mxu0
    %v609 = vrot.slane %v576, 7
    %v610 = vrot.slane %v589, 6
    %v611 = vrot.slane %v602, 5
    %v612 = vsel %vm525, %v563, %v609
    %v613 = vsel %vm527, %v610, %v611
    %v614 = vsel %vm529, %v612, %v613
    %v616 = vadd.f32 %v176, %v614
    %v617 = vtanh.pop %v616
    %v618 = vadd.f32 %v617, 1.0
    %v619 = vmul.f32 %v618, 0.5
    %v621 = vrot.slane %v617, 1
    %v623 = vadd.f32 %v621, 1.0
    %v624 = vmul.f32 %v623, 0.5
    %v625 = vrot.slane %v617, 3
    %v627 = vadd.f32 %v625, 1.0
    %v628 = vmul.f32 %v627, 0.5
    %v629 = vmul.f32 %v624, %v549
    %v630 = vrot.slane %v617, 2
    %v632 = vmul.f32 %v619, %v630
    %v633 = vadd.f32 %v629, %v632
    %v634 = vtanh.pop %v633
    %v635 = vmul.f32 %v628, %v634
    %v636 = vpack.c.bf16 %v635, %v635
    %637 = vmatpush.bf16.msra.mxu0 %v430
    %638 = vmatpush.bf16.msra.mxu0 %v426
    %639 = vmatpush.bf16.msra.mxu0 %v422
    %640 = vmatpush.bf16.msra.mxu0 %v418
    %641 = vmatpush.bf16.msra.mxu0 %v414
    %642 = vmatpush.bf16.msra.mxu0 %v410
    %643 = vmatpush.bf16.msra.mxu0 %v406
    %644 = vmatpush.bf16.msra.mxu0 %v402
    %645 = vmatmul.bf16.gmra.mxu0 %v636
    %v646 = vpop.f32.mrf.mxu0
    %v647 = vadd.f32 0.0, %v646
    %v648 = vpop.f32.mrf.mxu0
    %649 = vdwg.mxu0
    %650 = vmatpush.bf16.msra.mxu0 %v431
    %651 = vmatpush.bf16.msra.mxu0 %v427
    %652 = vmatpush.bf16.msra.mxu0 %v423
    %653 = vmatpush.bf16.msra.mxu0 %v419
    %654 = vmatpush.bf16.msra.mxu0 %v415
    %655 = vmatpush.bf16.msra.mxu0 %v411
    %656 = vmatpush.bf16.msra.mxu0 %v407
    %657 = vmatpush.bf16.msra.mxu0 %v403
    %658 = vmatmul.bf16.gmra.mxu0 %v636
    %v659 = vpop.f32.mrf.mxu0
    %v660 = vadd.f32 0.0, %v659
    %v661 = vpop.f32.mrf.mxu0
    %662 = vdwg.mxu0
    %663 = vmatpush.bf16.msra.mxu0 %v432
    %664 = vmatpush.bf16.msra.mxu0 %v428
    %665 = vmatpush.bf16.msra.mxu0 %v424
    %666 = vmatpush.bf16.msra.mxu0 %v420
    %667 = vmatpush.bf16.msra.mxu0 %v416
    %668 = vmatpush.bf16.msra.mxu0 %v412
    %669 = vmatpush.bf16.msra.mxu0 %v408
    %670 = vmatpush.bf16.msra.mxu0 %v404
    %671 = vmatmul.bf16.gmra.mxu0 %v636
    %v672 = vpop.f32.mrf.mxu0
    %v673 = vadd.f32 0.0, %v672
    %v674 = vpop.f32.mrf.mxu0
    %675 = vdwg.mxu0
    %676 = vmatpush.bf16.msra.mxu0 %v433
    %677 = vmatpush.bf16.msra.mxu0 %v429
    %678 = vmatpush.bf16.msra.mxu0 %v425
    %679 = vmatpush.bf16.msra.mxu0 %v421
    %680 = vmatpush.bf16.msra.mxu0 %v417
    %681 = vmatpush.bf16.msra.mxu0 %v413
    %682 = vmatpush.bf16.msra.mxu0 %v409
    %683 = vmatpush.bf16.msra.mxu0 %v405
    %684 = vmatmul.bf16.gmra.mxu0 %v636
    %v685 = vpop.f32.mrf.mxu0
    %v686 = vadd.f32 0.0, %v685
    %v687 = vpop.f32.mrf.mxu0
    %688 = vdwg.mxu0
    %v693 = vrot.slane %v660, 7
    %v694 = vrot.slane %v673, 6
    %v695 = vrot.slane %v686, 5
    %v696 = vsel %vm525, %v647, %v693
    %v697 = vsel %vm527, %v694, %v695
    %v698 = vsel %vm529, %v696, %v697
    %v700 = vadd.f32 %v197, %v698
    %v701 = vtanh.pop %v700
    %v702 = vadd.f32 %v701, 1.0
    %v703 = vmul.f32 %v702, 0.5
    %v705 = vrot.slane %v701, 1
    %v707 = vadd.f32 %v705, 1.0
    %v708 = vmul.f32 %v707, 0.5
    %v709 = vrot.slane %v701, 3
    %v711 = vadd.f32 %v709, 1.0
    %v712 = vmul.f32 %v711, 0.5
    %v713 = vmul.f32 %v708, %v633
    %v714 = vrot.slane %v701, 2
    %v716 = vmul.f32 %v703, %v714
    %v717 = vadd.f32 %v713, %v716
    %v718 = vtanh.pop %v717
    %v719 = vmul.f32 %v712, %v718
    %v720 = vpack.c.bf16 %v719, %v719
    %721 = vmatpush.bf16.msra.mxu0 %v430
    %722 = vmatpush.bf16.msra.mxu0 %v426
    %723 = vmatpush.bf16.msra.mxu0 %v422
    %724 = vmatpush.bf16.msra.mxu0 %v418
    %725 = vmatpush.bf16.msra.mxu0 %v414
    %726 = vmatpush.bf16.msra.mxu0 %v410
    %727 = vmatpush.bf16.msra.mxu0 %v406
    %728 = vmatpush.bf16.msra.mxu0 %v402
    %729 = vmatmul.bf16.gmra.mxu0 %v720
    %v730 = vpop.f32.mrf.mxu0
    %v731 = vadd.f32 0.0, %v730
    %v732 = vpop.f32.mrf.mxu0
    %733 = vdwg.mxu0
    %734 = vmatpush.bf16.msra.mxu0 %v431
    %735 = vmatpush.bf16.msra.mxu0 %v427
    %736 = vmatpush.bf16.msra.mxu0 %v423
    %737 = vmatpush.bf16.msra.mxu0 %v419
    %738 = vmatpush.bf16.msra.mxu0 %v415
    %739 = vmatpush.bf16.msra.mxu0 %v411
    %740 = vmatpush.bf16.msra.mxu0 %v407
    %741 = vmatpush.bf16.msra.mxu0 %v403
    %742 = vmatmul.bf16.gmra.mxu0 %v720
    %v743 = vpop.f32.mrf.mxu0
    %v744 = vadd.f32 0.0, %v743
    %v745 = vpop.f32.mrf.mxu0
    %746 = vdwg.mxu0
    %747 = vmatpush.bf16.msra.mxu0 %v432
    %748 = vmatpush.bf16.msra.mxu0 %v428
    %749 = vmatpush.bf16.msra.mxu0 %v424
    %750 = vmatpush.bf16.msra.mxu0 %v420
    %751 = vmatpush.bf16.msra.mxu0 %v416
    %752 = vmatpush.bf16.msra.mxu0 %v412
    %753 = vmatpush.bf16.msra.mxu0 %v408
    %754 = vmatpush.bf16.msra.mxu0 %v404
    %755 = vmatmul.bf16.gmra.mxu0 %v720
    %v756 = vpop.f32.mrf.mxu0
    %v757 = vadd.f32 0.0, %v756
    %v758 = vpop.f32.mrf.mxu0
    %759 = vdwg.mxu0
    %760 = vmatpush.bf16.msra.mxu0 %v433
    %761 = vmatpush.bf16.msra.mxu0 %v429
    %762 = vmatpush.bf16.msra.mxu0 %v425
    %763 = vmatpush.bf16.msra.mxu0 %v421
    %764 = vmatpush.bf16.msra.mxu0 %v417
    %765 = vmatpush.bf16.msra.mxu0 %v413
    %766 = vmatpush.bf16.msra.mxu0 %v409
    %767 = vmatpush.bf16.msra.mxu0 %v405
    %768 = vmatmul.bf16.gmra.mxu0 %v720
    %v769 = vpop.f32.mrf.mxu0
    %v770 = vadd.f32 0.0, %v769
    %v771 = vpop.f32.mrf.mxu0
    %772 = vdwg.mxu0
    %v777 = vrot.slane %v744, 7
    %v778 = vrot.slane %v757, 6
    %v779 = vrot.slane %v770, 5
    %v780 = vsel %vm525, %v731, %v777
    %v781 = vsel %vm527, %v778, %v779
    %v782 = vsel %vm529, %v780, %v781
    %v784 = vadd.f32 %v218, %v782
    %v785 = vtanh.pop %v784
    %v786 = vadd.f32 %v785, 1.0
    %v787 = vmul.f32 %v786, 0.5
    %v789 = vrot.slane %v785, 1
    %v791 = vadd.f32 %v789, 1.0
    %v792 = vmul.f32 %v791, 0.5
    %v793 = vrot.slane %v785, 3
    %v795 = vadd.f32 %v793, 1.0
    %v796 = vmul.f32 %v795, 0.5
    %v797 = vmul.f32 %v792, %v717
    %v798 = vrot.slane %v785, 2
    %v800 = vmul.f32 %v787, %v798
    %v801 = vadd.f32 %v797, %v800
    %v802 = vtanh.pop %v801
    %v803 = vmul.f32 %v796, %v802
    %v804 = vpack.c.bf16 %v803, %v803
    %805 = vmatpush.bf16.msra.mxu0 %v430
    %806 = vmatpush.bf16.msra.mxu0 %v426
    %807 = vmatpush.bf16.msra.mxu0 %v422
    %808 = vmatpush.bf16.msra.mxu0 %v418
    %809 = vmatpush.bf16.msra.mxu0 %v414
    %810 = vmatpush.bf16.msra.mxu0 %v410
    %811 = vmatpush.bf16.msra.mxu0 %v406
    %812 = vmatpush.bf16.msra.mxu0 %v402
    %813 = vmatmul.bf16.gmra.mxu0 %v804
    %v814 = vpop.f32.mrf.mxu0
    %v815 = vadd.f32 0.0, %v814
    %v816 = vpop.f32.mrf.mxu0
    %817 = vdwg.mxu0
    %818 = vmatpush.bf16.msra.mxu0 %v431
    %819 = vmatpush.bf16.msra.mxu0 %v427
    %820 = vmatpush.bf16.msra.mxu0 %v423
    %821 = vmatpush.bf16.msra.mxu0 %v419
    %822 = vmatpush.bf16.msra.mxu0 %v415
    %823 = vmatpush.bf16.msra.mxu0 %v411
    %824 = vmatpush.bf16.msra.mxu0 %v407
    %825 = vmatpush.bf16.msra.mxu0 %v403
    %826 = vmatmul.bf16.gmra.mxu0 %v804
    %v827 = vpop.f32.mrf.mxu0
    %v828 = vadd.f32 0.0, %v827
    %v829 = vpop.f32.mrf.mxu0
    %830 = vdwg.mxu0
    %831 = vmatpush.bf16.msra.mxu0 %v432
    %832 = vmatpush.bf16.msra.mxu0 %v428
    %833 = vmatpush.bf16.msra.mxu0 %v424
    %834 = vmatpush.bf16.msra.mxu0 %v420
    %835 = vmatpush.bf16.msra.mxu0 %v416
    %836 = vmatpush.bf16.msra.mxu0 %v412
    %837 = vmatpush.bf16.msra.mxu0 %v408
    %838 = vmatpush.bf16.msra.mxu0 %v404
    %839 = vmatmul.bf16.gmra.mxu0 %v804
    %v840 = vpop.f32.mrf.mxu0
    %v841 = vadd.f32 0.0, %v840
    %v842 = vpop.f32.mrf.mxu0
    %843 = vdwg.mxu0
    %844 = vmatpush.bf16.msra.mxu0 %v433
    %845 = vmatpush.bf16.msra.mxu0 %v429
    %846 = vmatpush.bf16.msra.mxu0 %v425
    %847 = vmatpush.bf16.msra.mxu0 %v421
    %848 = vmatpush.bf16.msra.mxu0 %v417
    %849 = vmatpush.bf16.msra.mxu0 %v413
    %850 = vmatpush.bf16.msra.mxu0 %v409
    %851 = vmatpush.bf16.msra.mxu0 %v405
    %852 = vmatmul.bf16.gmra.mxu0 %v804
    %v853 = vpop.f32.mrf.mxu0
    %v854 = vadd.f32 0.0, %v853
    %v855 = vpop.f32.mrf.mxu0
    %856 = vdwg.mxu0
    %v861 = vrot.slane %v828, 7
    %v862 = vrot.slane %v841, 6
    %v863 = vrot.slane %v854, 5
    %v864 = vsel %vm525, %v815, %v861
    %v865 = vsel %vm527, %v862, %v863
    %v866 = vsel %vm529, %v864, %v865
    %v868 = vadd.f32 %v239, %v866
    %v869 = vtanh.pop %v868
    %v870 = vadd.f32 %v869, 1.0
    %v871 = vmul.f32 %v870, 0.5
    %v873 = vrot.slane %v869, 1
    %v875 = vadd.f32 %v873, 1.0
    %v876 = vmul.f32 %v875, 0.5
    %v877 = vrot.slane %v869, 3
    %v879 = vadd.f32 %v877, 1.0
    %v880 = vmul.f32 %v879, 0.5
    %v881 = vmul.f32 %v876, %v801
    %v882 = vrot.slane %v869, 2
    %v884 = vmul.f32 %v871, %v882
    %v885 = vadd.f32 %v881, %v884
    %v886 = vtanh.pop %v885
    %v887 = vmul.f32 %v880, %v886
    %v888 = vpack.c.bf16 %v887, %v887
    %889 = vmatpush.bf16.msra.mxu0 %v430
    %890 = vmatpush.bf16.msra.mxu0 %v426
    %891 = vmatpush.bf16.msra.mxu0 %v422
    %892 = vmatpush.bf16.msra.mxu0 %v418
    %893 = vmatpush.bf16.msra.mxu0 %v414
    %894 = vmatpush.bf16.msra.mxu0 %v410
    %895 = vmatpush.bf16.msra.mxu0 %v406
    %896 = vmatpush.bf16.msra.mxu0 %v402
    %897 = vmatmul.bf16.gmra.mxu0 %v888
    %v898 = vpop.f32.mrf.mxu0
    %v899 = vadd.f32 0.0, %v898
    %v900 = vpop.f32.mrf.mxu0
    %901 = vdwg.mxu0
    %902 = vmatpush.bf16.msra.mxu0 %v431
    %903 = vmatpush.bf16.msra.mxu0 %v427
    %904 = vmatpush.bf16.msra.mxu0 %v423
    %905 = vmatpush.bf16.msra.mxu0 %v419
    %906 = vmatpush.bf16.msra.mxu0 %v415
    %907 = vmatpush.bf16.msra.mxu0 %v411
    %908 = vmatpush.bf16.msra.mxu0 %v407
    %909 = vmatpush.bf16.msra.mxu0 %v403
    %910 = vmatmul.bf16.gmra.mxu0 %v888
    %v911 = vpop.f32.mrf.mxu0
    %v912 = vadd.f32 0.0, %v911
    %v913 = vpop.f32.mrf.mxu0
    %914 = vdwg.mxu0
    %915 = vmatpush.bf16.msra.mxu0 %v432
    %916 = vmatpush.bf16.msra.mxu0 %v428
    %917 = vmatpush.bf16.msra.mxu0 %v424
    %918 = vmatpush.bf16.msra.mxu0 %v420
    %919 = vmatpush.bf16.msra.mxu0 %v416
    %920 = vmatpush.bf16.msra.mxu0 %v412
    %921 = vmatpush.bf16.msra.mxu0 %v408
    %922 = vmatpush.bf16.msra.mxu0 %v404
    %923 = vmatmul.bf16.gmra.mxu0 %v888
    %v924 = vpop.f32.mrf.mxu0
    %v925 = vadd.f32 0.0, %v924
    %v926 = vpop.f32.mrf.mxu0
    %927 = vdwg.mxu0
    %928 = vmatpush.bf16.msra.mxu0 %v433
    %929 = vmatpush.bf16.msra.mxu0 %v429
    %930 = vmatpush.bf16.msra.mxu0 %v425
    %931 = vmatpush.bf16.msra.mxu0 %v421
    %932 = vmatpush.bf16.msra.mxu0 %v417
    %933 = vmatpush.bf16.msra.mxu0 %v413
    %934 = vmatpush.bf16.msra.mxu0 %v409
    %935 = vmatpush.bf16.msra.mxu0 %v405
    %936 = vmatmul.bf16.gmra.mxu0 %v888
    %v937 = vpop.f32.mrf.mxu0
    %v938 = vadd.f32 0.0, %v937
    %v939 = vpop.f32.mrf.mxu0
    %940 = vdwg.mxu0
    %v945 = vrot.slane %v912, 7
    %v946 = vrot.slane %v925, 6
    %v947 = vrot.slane %v938, 5
    %v948 = vsel %vm525, %v899, %v945
    %v949 = vsel %vm527, %v946, %v947
    %v950 = vsel %vm529, %v948, %v949
    %v952 = vadd.f32 %v260, %v950
    %v953 = vtanh.pop %v952
    %v954 = vadd.f32 %v953, 1.0
    %v955 = vmul.f32 %v954, 0.5
    %v957 = vrot.slane %v953, 1
    %v959 = vadd.f32 %v957, 1.0
    %v960 = vmul.f32 %v959, 0.5
    %v961 = vrot.slane %v953, 3
    %v963 = vadd.f32 %v961, 1.0
    %v964 = vmul.f32 %v963, 0.5
    %v965 = vmul.f32 %v960, %v885
    %v966 = vrot.slane %v953, 2
    %v968 = vmul.f32 %v955, %v966
    %v969 = vadd.f32 %v965, %v968
    %v970 = vtanh.pop %v969
    %v971 = vmul.f32 %v964, %v970
    %v972 = vpack.c.bf16 %v971, %v971
    %973 = vmatpush.bf16.msra.mxu0 %v430
    %974 = vmatpush.bf16.msra.mxu0 %v426
    %975 = vmatpush.bf16.msra.mxu0 %v422
    %976 = vmatpush.bf16.msra.mxu0 %v418
    %977 = vmatpush.bf16.msra.mxu0 %v414
    %978 = vmatpush.bf16.msra.mxu0 %v410
    %979 = vmatpush.bf16.msra.mxu0 %v406
    %980 = vmatpush.bf16.msra.mxu0 %v402
    %981 = vmatmul.bf16.gmra.mxu0 %v972
    %v982 = vpop.f32.mrf.mxu0
    %v983 = vadd.f32 0.0, %v982
    %v984 = vpop.f32.mrf.mxu0
    %985 = vdwg.mxu0
    %986 = vmatpush.bf16.msra.mxu0 %v431
    %987 = vmatpush.bf16.msra.mxu0 %v427
    %988 = vmatpush.bf16.msra.mxu0 %v423
    %989 = vmatpush.bf16.msra.mxu0 %v419
    %990 = vmatpush.bf16.msra.mxu0 %v415
    %991 = vmatpush.bf16.msra.mxu0 %v411
    %992 = vmatpush.bf16.msra.mxu0 %v407
    %993 = vmatpush.bf16.msra.mxu0 %v403
    %994 = vmatmul.bf16.gmra.mxu0 %v972
    %v995 = vpop.f32.mrf.mxu0
    %v996 = vadd.f32 0.0, %v995
    %v997 = vpop.f32.mrf.mxu0
    %998 = vdwg.mxu0
    %999 = vmatpush.bf16.msra.mxu0 %v432
    %1000 = vmatpush.bf16.msra.mxu0 %v428
    %1001 = vmatpush.bf16.msra.mxu0 %v424
    %1002 = vmatpush.bf16.msra.mxu0 %v420
    %1003 = vmatpush.bf16.msra.mxu0 %v416
    %1004 = vmatpush.bf16.msra.mxu0 %v412
    %1005 = vmatpush.bf16.msra.mxu0 %v408
    %1006 = vmatpush.bf16.msra.mxu0 %v404
    %1007 = vmatmul.bf16.gmra.mxu0 %v972
    %v1008 = vpop.f32.mrf.mxu0
    %v1009 = vadd.f32 0.0, %v1008
    %v1010 = vpop.f32.mrf.mxu0
    %1011 = vdwg.mxu0
    %1012 = vmatpush.bf16.msra.mxu0 %v433
    %1013 = vmatpush.bf16.msra.mxu0 %v429
    %1014 = vmatpush.bf16.msra.mxu0 %v425
    %1015 = vmatpush.bf16.msra.mxu0 %v421
    %1016 = vmatpush.bf16.msra.mxu0 %v417
    %1017 = vmatpush.bf16.msra.mxu0 %v413
    %1018 = vmatpush.bf16.msra.mxu0 %v409
    %1019 = vmatpush.bf16.msra.mxu0 %v405
    %1020 = vmatmul.bf16.gmra.mxu0 %v972
    %v1021 = vpop.f32.mrf.mxu0
    %v1022 = vadd.f32 0.0, %v1021
    %v1023 = vpop.f32.mrf.mxu0
    %1024 = vdwg.mxu0
    %v1029 = vrot.slane %v996, 7
    %v1030 = vrot.slane %v1009, 6
    %v1031 = vrot.slane %v1022, 5
    %v1032 = vsel %vm525, %v983, %v1029
    %v1033 = vsel %vm527, %v1030, %v1031
    %v1034 = vsel %vm529, %v1032, %v1033
    %v1036 = vadd.f32 %v281, %v1034
    %v1037 = vtanh.pop %v1036
    %v1038 = vadd.f32 %v1037, 1.0
    %v1039 = vmul.f32 %v1038, 0.5
    %v1041 = vrot.slane %v1037, 1
    %v1043 = vadd.f32 %v1041, 1.0
    %v1044 = vmul.f32 %v1043, 0.5
    %v1045 = vrot.slane %v1037, 3
    %v1047 = vadd.f32 %v1045, 1.0
    %v1048 = vmul.f32 %v1047, 0.5
    %v1049 = vmul.f32 %v1044, %v969
    %v1050 = vrot.slane %v1037, 2
    %v1052 = vmul.f32 %v1039, %v1050
    %v1053 = vadd.f32 %v1049, %v1052
    %v1054 = vtanh.pop %v1053
    %v1055 = vmul.f32 %v1048, %v1054
    %v1056 = vpack.c.bf16 %v1055, %v1055
    %1057 = vmatpush.bf16.msra.mxu0 %v430
    %1058 = vmatpush.bf16.msra.mxu0 %v426
    %1059 = vmatpush.bf16.msra.mxu0 %v422
    %1060 = vmatpush.bf16.msra.mxu0 %v418
    %1061 = vmatpush.bf16.msra.mxu0 %v414
    %1062 = vmatpush.bf16.msra.mxu0 %v410
    %1063 = vmatpush.bf16.msra.mxu0 %v406
    %1064 = vmatpush.bf16.msra.mxu0 %v402
    %1065 = vmatmul.bf16.gmra.mxu0 %v1056
    %v1066 = vpop.f32.mrf.mxu0
    %v1067 = vadd.f32 0.0, %v1066
    %v1068 = vpop.f32.mrf.mxu0
    %1069 = vdwg.mxu0
    %1070 = vmatpush.bf16.msra.mxu0 %v431
    %1071 = vmatpush.bf16.msra.mxu0 %v427
    %1072 = vmatpush.bf16.msra.mxu0 %v423
    %1073 = vmatpush.bf16.msra.mxu0 %v419
    %1074 = vmatpush.bf16.msra.mxu0 %v415
    %1075 = vmatpush.bf16.msra.mxu0 %v411
    %1076 = vmatpush.bf16.msra.mxu0 %v407
    %1077 = vmatpush.bf16.msra.mxu0 %v403
    %1078 = vmatmul.bf16.gmra.mxu0 %v1056
    %v1079 = vpop.f32.mrf.mxu0
    %v1080 = vadd.f32 0.0, %v1079
    %v1081 = vpop.f32.mrf.mxu0
    %1082 = vdwg.mxu0
    %1083 = vmatpush.bf16.msra.mxu0 %v432
    %1084 = vmatpush.bf16.msra.mxu0 %v428
    %1085 = vmatpush.bf16.msra.mxu0 %v424
    %1086 = vmatpush.bf16.msra.mxu0 %v420
    %1087 = vmatpush.bf16.msra.mxu0 %v416
    %1088 = vmatpush.bf16.msra.mxu0 %v412
    %1089 = vmatpush.bf16.msra.mxu0 %v408
    %1090 = vmatpush.bf16.msra.mxu0 %v404
    %1091 = vmatmul.bf16.gmra.mxu0 %v1056
    %v1092 = vpop.f32.mrf.mxu0
    %v1093 = vadd.f32 0.0, %v1092
    %v1094 = vpop.f32.mrf.mxu0
    %1095 = vdwg.mxu0
    %1096 = vmatpush.bf16.msra.mxu0 %v433
    %1097 = vmatpush.bf16.msra.mxu0 %v429
    %1098 = vmatpush.bf16.msra.mxu0 %v425
    %1099 = vmatpush.bf16.msra.mxu0 %v421
    %1100 = vmatpush.bf16.msra.mxu0 %v417
    %1101 = vmatpush.bf16.msra.mxu0 %v413
    %1102 = vmatpush.bf16.msra.mxu0 %v409
    %1103 = vmatpush.bf16.msra.mxu0 %v405
    %1104 = vmatmul.bf16.gmra.mxu0 %v1056
    %v1105 = vpop.f32.mrf.mxu0
    %v1106 = vadd.f32 0.0, %v1105
    %v1107 = vpop.f32.mrf.mxu0
    %1108 = vdwg.mxu0
    %v1113 = vrot.slane %v1080, 7
    %v1114 = vrot.slane %v1093, 6
    %v1115 = vrot.slane %v1106, 5
    %v1116 = vsel %vm525, %v1067, %v1113
    %v1117 = vsel %vm527, %v1114, %v1115
    %v1118 = vsel %vm529, %v1116, %v1117
    %v1120 = vadd.f32 %v302, %v1118
    %v1121 = vtanh.pop %v1120
    %v1122 = vadd.f32 %v1121, 1.0
    %v1123 = vmul.f32 %v1122, 0.5
    %v1125 = vrot.slane %v1121, 1
    %v1127 = vadd.f32 %v1125, 1.0
    %v1128 = vmul.f32 %v1127, 0.5
    %v1129 = vrot.slane %v1121, 3
    %v1131 = vadd.f32 %v1129, 1.0
    %v1132 = vmul.f32 %v1131, 0.5
    %v1133 = vmul.f32 %v1128, %v1053
    %v1134 = vrot.slane %v1121, 2
    %v1136 = vmul.f32 %v1123, %v1134
    %v1137 = vadd.f32 %v1133, %v1136
    %v1138 = vtanh.pop %v1137
    %v1139 = vmul.f32 %v1132, %v1138
    %v1141 = vperm.slane %v635, 0
    %v1144 = vperm.slane %v719, 0
    %v1147 = vperm.slane %v803, 0
    %v1150 = vperm.slane %v887, 0
    %v1153 = vperm.slane %v971, 0
    %v1156 = vperm.slane %v1055, 0
    %v1159 = vperm.slane %v1139, 0
    %v1161 = vsel %vm525, %v551, %v1141
    %v1162 = vsel %vm529, %v1161, %v1144
    %vm1163 = vcmask 1042432
    %v1164 = vsel %vm1163, %v1162, %v1147
    %vm1165 = vcmask 1043456
    %v1166 = vsel %vm1165, %v1164, %v1150
    %vm1167 = vcmask 1044480
    %v1168 = vsel %vm1167, %v1166, %v1153
    %vm1169 = vcmask 1045504
    %v1170 = vsel %vm1169, %v1168, %v1156
    %vm1171 = vcmask 1046528
    %v1172 = vsel %vm1171, %v1170, %v1159
    %1173 = vst [vmem:[#allocation12] sm:$0xff] %v1172
    %1174 = vst [vmem:[#allocation13] sm:$0x1] %v1139
    %1175 = vst [vmem:[#allocation15] sm:$0x1] %v1137
    // Predicated region
    $region50: #{lstm_component_forward.1} parent=1 // pred_check
      _
    $region51: #{lstm_component_forward.1} parent=1 // pred_check_branch
      %1177 = sbr.rel (0) target = $region53
    $region52: #{lstm_component_forward.1} parent=1 // pred_region
      %1179 = vsyncadd [#allocation4], 0
      %s1181 = sshll.u32 [#allocation12], 4
      %s1182 = int_to_ptr.vmem [resolvable:$true] %s1181
      %s1183 = sshll.u32 %s7, 4
      %s1184 = int_to_ptr.hbm [resolvable:$true] %s1183
      %1186 = dma.vmem_to_hbm [thread:$0]  %s1182, 128, %s1184, [#allocation4]
    $region53: #{lstm_component_forward.1} parent=1 // pred_fallthru
      _
    // Predicated region
    $region54: #{lstm_component_forward.1} parent=1 // pred_check
      _
    $region55: #{lstm_component_forward.1} parent=1 // pred_check_branch
      %1188 = sbr.rel (0) target = $region57
    $region56: #{lstm_component_forward.1} parent=1 // pred_region
      %1190 = vsyncadd [#allocation14], 0
      %s1192 = sshll.u32 [#allocation13], 4
      %s1193 = int_to_ptr.vmem [resolvable:$true] %s1192
      %s1194 = sshll.u32 %s8, 4
      %s1195 = int_to_ptr.hbm [resolvable:$true] %s1194
      %1197 = dma.vmem_to_hbm [thread:$0]  %s1193, 16, %s1195, [#allocation14]
    $region57: #{lstm_component_forward.1} parent=1 // pred_fallthru
      _
    // Predicated region
    $region58: #{lstm_component_forward.1} parent=1 // pred_check
      _
    $region59: #{lstm_component_forward.1} parent=1 // pred_check_branch
      %1199 = sbr.rel (0) target = $region61
    $region60: #{lstm_component_forward.1} parent=1 // pred_region
      %1201 = vsyncadd [#allocation14], 0
      %s1203 = sshll.u32 [#allocation15], 4
      %s1204 = int_to_ptr.vmem [resolvable:$true] %s1203
      %s1205 = sshll.u32 %s9, 4
      %s1206 = int_to_ptr.hbm [resolvable:$true] %s1205
      %1208 = dma.vmem_to_hbm [thread:$0]  %s1204, 16, %s1206, [#allocation14]
    $region61: #{lstm_component_forward.1} parent=1 // pred_fallthru
      _
    // Predicated region
    $region62: #{lstm_component_forward.1} parent=1 // pred_check
      _
    $region63: #{lstm_component_forward.1} parent=1 // pred_check_branch
      %1210 = sbr.rel (0) target = $region65
    $region64: #{lstm_component_forward.1} parent=1 // pred_region
      %1212 = dma.done [#allocation4], 128
    $region65: #{lstm_component_forward.1} parent=1 // pred_fallthru
      _
    // Predicated region
    $region66: #{lstm_component_forward.1} parent=1 // pred_check
      _
    $region67: #{lstm_component_forward.1} parent=1 // pred_check_branch
      %1214 = sbr.rel (0) target = $region69
    $region68: #{lstm_component_forward.1} parent=1 // pred_region
      %1216 = dma.done [#allocation14], 16
    $region69: #{lstm_component_forward.1} parent=1 // pred_fallthru
      _
    // Predicated region
    $region70: #{lstm_component_forward.1} parent=1 // pred_check
      _
    $region71: #{lstm_component_forward.1} parent=1 // pred_check_branch
      %1218 = sbr.rel (0) target = $region73
    $region72: #{lstm_component_forward.1} parent=1 // pred_region
      %1220 = dma.done [#allocation14], 16
    $region73: #{lstm_component_forward.1} parent=1 // pred_fallthru
      _
    %1221 = vsyncpa [#allocation3], 1
    %1222 = vsyncpa [#allocation10], 1
    %1223 = vsyncpa [#allocation4], 1
    %1224 = vsyncpa [#allocation14], 1
    %1225 = vsyncpa [#allocation5], 1
    %1226 = vsyncpa [#allocation7], 1

</llo_original>
